<compile_context>
chip_gen: v6e
topology: v6e:2x2x1
jax: 0.10.0
libtpu: 0.0.40
codegen_flags: <defaults>
</compile_context>

<pallas_src>
import math

import jax
import jax.numpy as jnp
from jax.experimental import pallas as pl
from jax.experimental.pallas import tpu as pltpu


IN_DIM = 128
HIDDEN = [256, 512, 256, 128]
OUT_DIM = 2
LANE = 128                       # lane-dense padded width of the final layer
TILE_B = 256                     # default batch rows per grid step (MXU-friendly)

# Packed-bias layout: [b1(256) | b2(512) | b3(256) | b4(128) | b5_padded(128)]
_BIAS_SIZES = HIDDEN + [LANE]
BIAS_OFFSETS = [0]
for _s in _BIAS_SIZES:
    BIAS_OFFSETS.append(BIAS_OFFSETS[-1] + _s)   # [0, 256, 768, 1024, 1152, 1280]
BIAS_TOTAL = BIAS_OFFSETS[-1]                    # 1280


def mlp_kernel(x_ref, w1_ref, w2_ref, w3_ref, w4_ref, w5_ref, b_ref, out_ref):
    """One batch tile: 5 fused matmuls (bf16 in, f32 acc) + ReLU + 2-class softmax."""
    w_refs = (w1_ref, w2_ref, w3_ref, w4_ref)

    h = x_ref[...].astype(jnp.bfloat16)
    for li in range(4):
        lo, hi = BIAS_OFFSETS[li], BIAS_OFFSETS[li + 1]
        a = jnp.dot(h, w_refs[li][...], preferred_element_type=jnp.float32)
        a = a + b_ref[:, lo:hi]
        h = jnp.maximum(a, 0.0).astype(jnp.bfloat16)

    # Final layer, padded to 128 output lanes (cols >= 2 have zero weights/bias).
    lo, hi = BIAS_OFFSETS[4], BIAS_OFFSETS[5]
    logits = jnp.dot(h, w5_ref[...], preferred_element_type=jnp.float32) + b_ref[:, lo:hi]

    # softmax over 2 classes == sigmoid of the logit difference (no cross-lane reduce;
    # exp/sigmoid runs on the EUP slot, essentially free next to the matmuls).
    d = logits[:, 1:2] - logits[:, 0:1]          # (tile_b, 1)
    p1 = jax.nn.sigmoid(d)
    p0 = 1.0 - p1

    # Lane-dense (tile_b, 128) store; class probs live in columns 0 and 1.
    col = jax.lax.broadcasted_iota(jnp.int32, out_ref.shape, 1)
    out_ref[...] = jnp.where(col == 0, p0, jnp.where(col == 1, p1, jnp.float32(0.0)))


def init_params(key):
    """PyTorch-style uniform(+/- 1/sqrt(fan_in)) init.

    Returns:
      weights: list of 5 bf16 arrays, shape (in_features, out_features); the last
               one is zero-padded from (128, 2) to (128, 128) for lane-dense output.
      bias_packed: (1, 1280) f32 array with all biases concatenated (b5 zero-padded).
    """
    dims = [IN_DIM] + HIDDEN + [OUT_DIM]
    weights, biases = [], []
    for i in range(len(dims) - 1):
        fan_in, fan_out = dims[i], dims[i + 1]
        key, kw, kb = jax.random.split(key, 3)
        bound = 1.0 / math.sqrt(fan_in)
        w = jax.random.uniform(kw, (fan_in, fan_out), jnp.float32, -bound, bound)
        b = jax.random.uniform(kb, (fan_out,), jnp.float32, -bound, bound)
        weights.append(w)
        biases.append(b)

    # Pad the final (128, 2) layer to (128, 128) so the last matmul / store is lane-dense.
    w5 = jnp.zeros((dims[-2], LANE), jnp.float32).at[:, :OUT_DIM].set(weights[-1])
    b5 = jnp.zeros((LANE,), jnp.float32).at[:OUT_DIM].set(biases[-1])
    weights[-1] = w5
    biases[-1] = b5

    weights_bf16 = [w.astype(jnp.bfloat16) for w in weights]
    bias_packed = jnp.concatenate(biases).reshape(1, BIAS_TOTAL).astype(jnp.float32)
    return weights_bf16, bias_packed


def mlp_forward(x, weights, bias_packed, *, tile_b=TILE_B):
    """x: (B, 128) f32 -> (B, 2) f32 class probabilities."""
    B = x.shape[0]
    # Don't tile wider than the (8-row aligned) batch; keeps small batches cheap
    # while satisfying the (8, 128) sublane/lane block constraint.
    tile_b = min(tile_b, pl.cdiv(B, 8) * 8)
    Bp = pl.cdiv(B, tile_b) * tile_b
    if Bp != B:
        x = jnp.pad(x, ((0, Bp - B), (0, 0)))
    grid = (Bp // tile_b,)

    # Weights/biases: constant index_map -> DMA'd once, VMEM-resident across batch tiles.
    w_specs = [pl.BlockSpec(w.shape, lambda i: (0, 0)) for w in weights]
    b_spec = pl.BlockSpec((1, BIAS_TOTAL), lambda i: (0, 0))

    out = pl.pallas_call(
        mlp_kernel,
        out_shape=jax.ShapeDtypeStruct((Bp, LANE), jnp.float32),
        grid_spec=pltpu.PrefetchScalarGridSpec(
            num_scalar_prefetch=0,
            grid=grid,
            in_specs=[pl.BlockSpec((tile_b, IN_DIM), lambda i: (i, 0))]
                     + w_specs + [b_spec],
            out_specs=pl.BlockSpec((tile_b, LANE), lambda i: (i, 0)),
        ),
        compiler_params=pltpu.CompilerParams(
            dimension_semantics=("parallel",),
        ),
    )(x, *weights, bias_packed)

    # Lane-dense slab -> the 2 real class columns, trim any batch padding.
    return out[:B, :OUT_DIM]


if __name__ == "__main__":
    key = jax.random.PRNGKey(0)
    key, kx = jax.random.split(key)

    B = 32  # small demo batch; tile_b=16 -> two grid steps through the pipeline
    x = jax.random.normal(kx, (B, IN_DIM), jnp.float32)

    weights, bias_packed = init_params(key)

    out = mlp_forward(x, weights, bias_packed, tile_b=16)
    out = jax.block_until_ready(out)

    # Pure-JAX reference with identical numerics (bf16 weights/activations, f32 accum).
    h = x
    for li in range(4):
        lo, hi = BIAS_OFFSETS[li], BIAS_OFFSETS[li + 1]
        a = jnp.dot(h.astype(jnp.bfloat16), weights[li],
                    preferred_element_type=jnp.float32) + bias_packed[0, lo:hi]
        h = jnp.maximum(a, 0.0)
    logits = jnp.dot(h.astype(jnp.bfloat16), weights[4],
                     preferred_element_type=jnp.float32) + bias_packed[0, BIAS_OFFSETS[4]:]
    ref = jax.nn.softmax(logits[:, :OUT_DIM], axis=1)

    assert out.shape == (B, OUT_DIM)
    assert jnp.allclose(out, ref, atol=1e-4, rtol=1e-4), float(jnp.max(jnp.abs(out - ref)))
    assert jnp.allclose(jnp.sum(out, axis=1), 1.0, atol=1e-5)

    print("KERNEL_OK")
</pallas_src>

<mosaic_0001>
module attributes {stable_mosaic.version = 11 : i64} {
  func.func @mlp_kernel(%arg0: i32, %arg1: memref<16x128xf32, #tpu.memory_space<vmem>>, %arg2: memref<128x256xbf16, #tpu.memory_space<vmem>>, %arg3: memref<256x512xbf16, #tpu.memory_space<vmem>>, %arg4: memref<512x256xbf16, #tpu.memory_space<vmem>>, %arg5: memref<256x128xbf16, #tpu.memory_space<vmem>>, %arg6: memref<128x128xbf16, #tpu.memory_space<vmem>>, %arg7: memref<1x1280xf32, #tpu.memory_space<vmem>>, %arg8: memref<16x128xf32, #tpu.memory_space<vmem>>) attributes {dimension_semantics = [#tpu.dimension_semantics<parallel>], iteration_bounds = array<i64: 2>, scalar_prefetch = 0 : i64, scratch_operands = 0 : i64, tpu.core_type = #tpu.core_type<tc>, window_params = [{transform_indices = @transform_0, window_bounds = array<i64: 16, 128>}, {pipeline_mode = #tpu.pipeline_mode<synchronous>, transform_indices = @transform_1, window_bounds = array<i64: 128, 256>}, {pipeline_mode = #tpu.pipeline_mode<synchronous>, transform_indices = @transform_2, window_bounds = array<i64: 256, 512>}, {pipeline_mode = #tpu.pipeline_mode<synchronous>, transform_indices = @transform_3, window_bounds = array<i64: 512, 256>}, {pipeline_mode = #tpu.pipeline_mode<synchronous>, transform_indices = @transform_4, window_bounds = array<i64: 256, 128>}, {pipeline_mode = #tpu.pipeline_mode<synchronous>, transform_indices = @transform_5, window_bounds = array<i64: 128, 128>}, {pipeline_mode = #tpu.pipeline_mode<synchronous>, transform_indices = @transform_6, window_bounds = array<i64: 1, 1280>}, {transform_indices = @transform_7, window_bounds = array<i64: 16, 128>}]} {
    %c0 = arith.constant 0 : index
    %c0_0 = arith.constant 0 : index
    %0 = vector.load %arg1[%c0, %c0_0] : memref<16x128xf32, #tpu.memory_space<vmem>>, vector<16x128xf32>
    %1 = arith.truncf %0 : vector<16x128xf32> to vector<16x128xbf16>
    %c0_1 = arith.constant 0 : index
    %c0_2 = arith.constant 0 : index
    %2 = vector.load %arg2[%c0_1, %c0_2] : memref<128x256xbf16, #tpu.memory_space<vmem>>, vector<128x256xbf16>
    %cst = arith.constant dense<0.000000e+00> : vector<16x256xf32>
    %3 = tpu.matmul %1, %2, %cst {dimension_numbers = #tpu.dot_dimension_numbers<[1], [0], [0], [1], [0, 0, 1, 1], [], []>} : vector<16x128xbf16>, vector<128x256xbf16>, vector<16x256xf32> -> vector<16x256xf32>
    %c0_3 = arith.constant 0 : index
    %c0_4 = arith.constant 0 : index
    %4 = vector.load %arg7[%c0_3, %c0_4] : memref<1x1280xf32, #tpu.memory_space<vmem>>, vector<1x256xf32>
    %5 = vector.broadcast %4 : vector<1x256xf32> to vector<16x256xf32>
    %6 = arith.addf %3, %5 : vector<16x256xf32>
    %cst_5 = arith.constant 0.000000e+00 : f32
    %7 = vector.broadcast %cst_5 : f32 to vector<16x256xf32>
    %8 = arith.maximumf %6, %7 : vector<16x256xf32>
    %9 = arith.truncf %8 : vector<16x256xf32> to vector<16x256xbf16>
    %c0_6 = arith.constant 0 : index
    %c0_7 = arith.constant 0 : index
    %10 = vector.load %arg3[%c0_6, %c0_7] : memref<256x512xbf16, #tpu.memory_space<vmem>>, vector<256x512xbf16>
    %cst_8 = arith.constant dense<0.000000e+00> : vector<16x512xf32>
    %11 = tpu.matmul %9, %10, %cst_8 {dimension_numbers = #tpu.dot_dimension_numbers<[1], [0], [0], [1], [0, 0, 1, 1], [], []>} : vector<16x256xbf16>, vector<256x512xbf16>, vector<16x512xf32> -> vector<16x512xf32>
    %c0_9 = arith.constant 0 : index
    %c256 = arith.constant 256 : index
    %12 = vector.load %arg7[%c0_9, %c256] : memref<1x1280xf32, #tpu.memory_space<vmem>>, vector<1x512xf32>
    %13 = vector.broadcast %12 : vector<1x512xf32> to vector<16x512xf32>
    %14 = arith.addf %11, %13 : vector<16x512xf32>
    %cst_10 = arith.constant 0.000000e+00 : f32
    %15 = vector.broadcast %cst_10 : f32 to vector<16x512xf32>
    %16 = arith.maximumf %14, %15 : vector<16x512xf32>
    %17 = arith.truncf %16 : vector<16x512xf32> to vector<16x512xbf16>
    %c0_11 = arith.constant 0 : index
    %c0_12 = arith.constant 0 : index
    %18 = vector.load %arg4[%c0_11, %c0_12] : memref<512x256xbf16, #tpu.memory_space<vmem>>, vector<512x256xbf16>
    %cst_13 = arith.constant dense<0.000000e+00> : vector<16x256xf32>
    %19 = tpu.matmul %17, %18, %cst_13 {dimension_numbers = #tpu.dot_dimension_numbers<[1], [0], [0], [1], [0, 0, 1, 1], [], []>} : vector<16x512xbf16>, vector<512x256xbf16>, vector<16x256xf32> -> vector<16x256xf32>
    %c0_14 = arith.constant 0 : index
    %c768 = arith.constant 768 : index
    %20 = vector.load %arg7[%c0_14, %c768] : memref<1x1280xf32, #tpu.memory_space<vmem>>, vector<1x256xf32>
    %21 = vector.broadcast %20 : vector<1x256xf32> to vector<16x256xf32>
    %22 = arith.addf %19, %21 : vector<16x256xf32>
    %cst_15 = arith.constant 0.000000e+00 : f32
    %23 = vector.broadcast %cst_15 : f32 to vector<16x256xf32>
    %24 = arith.maximumf %22, %23 : vector<16x256xf32>
    %25 = arith.truncf %24 : vector<16x256xf32> to vector<16x256xbf16>
    %c0_16 = arith.constant 0 : index
    %c0_17 = arith.constant 0 : index
    %26 = vector.load %arg5[%c0_16, %c0_17] : memref<256x128xbf16, #tpu.memory_space<vmem>>, vector<256x128xbf16>
    %cst_18 = arith.constant dense<0.000000e+00> : vector<16x128xf32>
    %27 = tpu.matmul %25, %26, %cst_18 {dimension_numbers = #tpu.dot_dimension_numbers<[1], [0], [0], [1], [0, 0, 1, 1], [], []>} : vector<16x256xbf16>, vector<256x128xbf16>, vector<16x128xf32> -> vector<16x128xf32>
    %c0_19 = arith.constant 0 : index
    %c1024 = arith.constant 1024 : index
    %28 = vector.load %arg7[%c0_19, %c1024] : memref<1x1280xf32, #tpu.memory_space<vmem>>, vector<1x128xf32>
    %29 = vector.broadcast %28 : vector<1x128xf32> to vector<16x128xf32>
    %30 = arith.addf %27, %29 : vector<16x128xf32>
    %cst_20 = arith.constant 0.000000e+00 : f32
    %31 = vector.broadcast %cst_20 : f32 to vector<16x128xf32>
    %32 = arith.maximumf %30, %31 : vector<16x128xf32>
    %33 = arith.truncf %32 : vector<16x128xf32> to vector<16x128xbf16>
    %c0_21 = arith.constant 0 : index
    %c0_22 = arith.constant 0 : index
    %34 = vector.load %arg6[%c0_21, %c0_22] : memref<128x128xbf16, #tpu.memory_space<vmem>>, vector<128x128xbf16>
    %cst_23 = arith.constant dense<0.000000e+00> : vector<16x128xf32>
    %35 = tpu.matmul %33, %34, %cst_23 {dimension_numbers = #tpu.dot_dimension_numbers<[1], [0], [0], [1], [0, 0, 1, 1], [], []>} : vector<16x128xbf16>, vector<128x128xbf16>, vector<16x128xf32> -> vector<16x128xf32>
    %c0_24 = arith.constant 0 : index
    %c1152 = arith.constant 1152 : index
    %36 = vector.load %arg7[%c0_24, %c1152] : memref<1x1280xf32, #tpu.memory_space<vmem>>, vector<1x128xf32>
    %37 = vector.broadcast %36 : vector<1x128xf32> to vector<16x128xf32>
    %38 = arith.addf %35, %37 : vector<16x128xf32>
    %39 = vector.extract_strided_slice %38 {offsets = [0, 1], sizes = [16, 1], strides = [1, 1]} : vector<16x128xf32> to vector<16x1xf32>
    %40 = vector.extract_strided_slice %38 {offsets = [0, 0], sizes = [16, 1], strides = [1, 1]} : vector<16x128xf32> to vector<16x1xf32>
    %41 = arith.subf %39, %40 : vector<16x1xf32>
    %42 = arith.negf %41 : vector<16x1xf32>
    %43 = math.exp %42 : vector<16x1xf32>
    %cst_25 = arith.constant 1.000000e+00 : f32
    %44 = vector.broadcast %cst_25 : f32 to vector<16x1xf32>
    %45 = arith.addf %44, %43 : vector<16x1xf32>
    %46 = arith.divf %44, %45 : vector<16x1xf32>
    %cst_26 = arith.constant 1.000000e+00 : f32
    %47 = vector.broadcast %cst_26 : f32 to vector<16x1xf32>
    %48 = arith.subf %47, %46 : vector<16x1xf32>
    %49 = tpu.iota {dimensions = array<i32: 1>} : vector<16x128xi32>
    %c0_i32 = arith.constant 0 : i32
    %50 = vector.broadcast %c0_i32 : i32 to vector<16x128xi32>
    %51 = arith.cmpi eq, %49, %50 : vector<16x128xi32>
    %c1_i32 = arith.constant 1 : i32
    %52 = vector.broadcast %c1_i32 : i32 to vector<16x128xi32>
    %53 = arith.cmpi eq, %49, %52 : vector<16x128xi32>
    %cst_27 = arith.constant 0.000000e+00 : f32
    %54 = vector.shape_cast %46 : vector<16x1xf32> to vector<16x1xf32>
    %55 = vector.broadcast %54 : vector<16x1xf32> to vector<16x128xf32>
    %56 = vector.broadcast %cst_27 : f32 to vector<16x128xf32>
    %57 = arith.select %53, %55, %56 : vector<16x128xi1>, vector<16x128xf32>
    %58 = vector.shape_cast %48 : vector<16x1xf32> to vector<16x1xf32>
    %59 = vector.broadcast %58 : vector<16x1xf32> to vector<16x128xf32>
    %60 = arith.select %51, %59, %57 : vector<16x128xi1>, vector<16x128xf32>
    %c0_28 = arith.constant 0 : index
    %c0_29 = arith.constant 0 : index
    %61 = vector.load %arg8[%c0_28, %c0_29] : memref<16x128xf32, #tpu.memory_space<vmem>>, vector<16x128xf32>
    tpu.vector_store %arg8[%c0_28, %c0_29], %60 {strides = array<i32>} : memref<16x128xf32, #tpu.memory_space<vmem>>, vector<16x128xf32>,
    return
  }
  func.func @transform_0(%arg0: i32) -> (i32, i32) {
    %c0_i32 = arith.constant 0 : i32
    %c0_i32_0 = arith.constant 0 : i32
    return %arg0, %c0_i32 : i32, i32
  }
  func.func @transform_1(%arg0: i32) -> (i32, i32) {
    %c0_i32 = arith.constant 0 : i32
    %c0_i32_0 = arith.constant 0 : i32
    %c0_i32_1 = arith.constant 0 : i32
    return %c0_i32, %c0_i32_0 : i32, i32
  }
  func.func @transform_2(%arg0: i32) -> (i32, i32) {
    %c0_i32 = arith.constant 0 : i32
    %c0_i32_0 = arith.constant 0 : i32
    %c0_i32_1 = arith.constant 0 : i32
    return %c0_i32, %c0_i32_0 : i32, i32
  }
  func.func @transform_3(%arg0: i32) -> (i32, i32) {
    %c0_i32 = arith.constant 0 : i32
    %c0_i32_0 = arith.constant 0 : i32
    %c0_i32_1 = arith.constant 0 : i32
    return %c0_i32, %c0_i32_0 : i32, i32
  }
  func.func @transform_4(%arg0: i32) -> (i32, i32) {
    %c0_i32 = arith.constant 0 : i32
    %c0_i32_0 = arith.constant 0 : i32
    %c0_i32_1 = arith.constant 0 : i32
    return %c0_i32, %c0_i32_0 : i32, i32
  }
  func.func @transform_5(%arg0: i32) -> (i32, i32) {
    %c0_i32 = arith.constant 0 : i32
    %c0_i32_0 = arith.constant 0 : i32
    %c0_i32_1 = arith.constant 0 : i32
    return %c0_i32, %c0_i32_0 : i32, i32
  }
  func.func @transform_6(%arg0: i32) -> (i32, i32) {
    %c0_i32 = arith.constant 0 : i32
    %c0_i32_0 = arith.constant 0 : i32
    %c0_i32_1 = arith.constant 0 : i32
    return %c0_i32, %c0_i32_0 : i32, i32
  }
  func.func @transform_7(%arg0: i32) -> (i32, i32) {
    %c0_i32 = arith.constant 0 : i32
    %c0_i32_0 = arith.constant 0 : i32
    return %arg0, %c0_i32 : i32, i32
  }
}

</mosaic_0001>

<llo_original>
// kernel: tpu_custom_call.1
$region0: #{tpu_custom_call.1}
  #allocation0 [shape = 'u32[]', space=smem, size = 0x4, offset = 0x4, fixed_abs, tag = 'smem constant byte address 0x4 - core index']
  #allocation1 [shape = 'u32[144,128]{1,0:T(1,128)}', space=vmem, size = 0x12000, scoped, tag = 'internal scratch']
  %s0 = inlined_call_operand.hbm [shape: f32[32,128], index: 0, kind: input, shape index: {}]
  %s1 = inlined_call_operand.hbm [shape: bf16[128,256], index: 1, kind: input, shape index: {}]
  %s2 = inlined_call_operand.hbm [shape: bf16[256,512], index: 2, kind: input, shape index: {}]
  %s3 = inlined_call_operand.hbm [shape: bf16[512,256], index: 3, kind: input, shape index: {}]
  %s4 = inlined_call_operand.hbm [shape: bf16[256,128], index: 4, kind: input, shape index: {}]
  %s5 = inlined_call_operand.hbm [shape: bf16[128,128], index: 5, kind: input, shape index: {}]
  %s6 = inlined_call_operand.vmem [shape: f32[1,1280], index: 6, kind: input, shape index: {}]
  %s7 = inlined_call_operand.hbm [shape: f32[32,128], index: 7, kind: output, shape index: {}]
  %s8 = sld [smem:[#allocation0]]
  $region85: #{tpu_custom_call.1} parent=0
    _
  %s10 = ssub.s32 1, %s8
  %s11 = scalar_select 0, %s10, %s8
  $region1: #{tpu_custom_call.1} parent=0
    #allocation2 [shape = 'u8[16384]{0}', space=vmem, size = 0x4000, scoped, tag = 'input window, operand 0']
    #allocation3 [shape = 's32[2]{0}', space=sflag, size = 0x8, scoped, tag = 'scoped memory for tpu_custom_call.1']
    #allocation4 [shape = 's32[2]{0}', space=sflag, size = 0x8, scoped, tag = 'scoped memory for tpu_custom_call.1']
    #allocation5 [shape = 'u8[65536]{0}', space=vmem, size = 0x10000, scoped, tag = 'input window, operand 1, single buffered']
    #allocation6 [shape = 's32[1]{0}', space=sflag, size = 0x4, scoped, tag = 'scoped memory for tpu_custom_call.1']
    #allocation7 [shape = 'u8[262144]{0}', space=vmem, size = 0x40000, scoped, tag = 'input window, operand 2, single buffered']
    #allocation8 [shape = 'u8[262144]{0}', space=vmem, size = 0x40000, scoped, tag = 'input window, operand 3, single buffered']
    #allocation9 [shape = 's32[1]{0}', space=sflag, size = 0x4, scoped, tag = 'scoped memory for tpu_custom_call.1']
    #allocation10 [shape = 'u8[65536]{0}', space=vmem, size = 0x10000, scoped, tag = 'input window, operand 4, single buffered']
    #allocation11 [shape = 'u8[32768]{0}', space=vmem, size = 0x8000, scoped, tag = 'input window, operand 5, single buffered']
    #allocation12 [shape = 's32[1]{0}', space=sflag, size = 0x4, scoped, tag = 'scoped memory for tpu_custom_call.1']
    #allocation13 [shape = 'u8[16384]{0}', space=vmem, size = 0x4000, scoped, tag = 'output window, operand 0']
    %12 = vsyncpa [#allocation3], 0
    %s13 = scalar_lea.sflag [#allocation3], 1
    %14 = vsyncpa %s13, 0
    %15 = vsyncpa [#allocation6], 0
    %16 = vsyncpa [#allocation9], 0
    %17 = vsyncpa [#allocation12], 0
    %18 = vsyncpa [#allocation4], 0
    %s19 = scalar_lea.sflag [#allocation4], 1
    %20 = vsyncpa %s19, 0
    loop: start=0, step=1, limit=4
    $region2: #{tpu_custom_call.1} parent=1 // loop_pre_header
      _
    $region3: #{tpu_custom_call.1} parent=1 // loop_header
      %s22 = sphi 0, %s26
      %p23 = scmp.ge.s32.totalorder %s22, 4
      %s32 = sphi 0, %s34
      %s35 = sphi 0, %s32
      %s36 = sphi 0, %s35
      %s52 = sphi 0, %s36
      %s56 = sphi 0, %s56
      %s58 = sphi 0, %s56
      %s59 = sphi 0, %s58
      %s73 = sphi 0, %s59
      %s77 = sphi 0, %s77
      %s79 = sphi 0, %s77
      %s80 = sphi 0, %s79
      %s94 = sphi 0, %s80
      %s98 = sphi 0, %s98
      %s100 = sphi 0, %s98
      %s101 = sphi 0, %s100
      %s115 = sphi 0, %s101
      %s119 = sphi 0, %s119
      %s121 = sphi 0, %s119
      %s122 = sphi 0, %s121
      %s136 = sphi 0, %s122
      %s140 = sphi 0, %s140
      %s142 = sphi 0, %s140
      %s143 = sphi 0, %s142
      %s157 = sphi 0, %s143
      %s161 = sphi 0, %s161
      %s163 = sphi 0, %s161
      %s164 = sphi 0, %s163
      %s178 = sphi 0, %s164
      %s184 = sphi 0, %s186
      %s187 = sphi 0, %s184
      %s188 = sphi 0, %s187
      %s204 = sphi 0, %s188
    $region4: #{tpu_custom_call.1} parent=1 // loop_header_branch
      %25 = sbr.rel (%p23) target = $region8
    $region5: #{tpu_custom_call.1} parent=1 // loop_body
      %s27 = ssub.s32 %s22, 1
      %s28 = ssub.s32 %s22, 2
      %s29 = sadd.s32 %s22, 1
      %s30 = ssub.s32 %s22, %s29
      %p31 = scmp.eq.s32.totalorder %s30, 0
      %s33 = sadd.s32 %s32, 1
      %s34 = scalar_select %p31, %s32, %s33
      %p37 = pneg %p31
      %p38 = scmp.eq.s32.totalorder %s22, 1
      %p39 = por %p37, %p38
      %p40 = scmp.ne.s32.totalorder %s32, %s35
      %p41 = scmp.eq.s32.totalorder %s22, 0
      %p42 = por %p40, %p41
      %p43 = scmp.ne.s32.totalorder %s32, %s35
      %p44 = scmp.eq.s32.totalorder %s27, 1
      %p45 = por %p43, %p44
      %p46 = scmp.ne.s32.totalorder %s35, %s36
      %p47 = scmp.eq.s32.totalorder %s27, 0
      %p48 = por %p46, %p47
      %p49 = scmp.ne.s32.totalorder %s35, %s36
      %p50 = scmp.eq.s32.totalorder %s28, 1
      %p51 = por %p49, %p50
      %p53 = scmp.ne.s32.totalorder %s36, %s52
      %p54 = scmp.eq.s32.totalorder %s28, 0
      %p55 = por %p53, %p54
      %s57 = sadd.s32 %s56, 1
      %p60 = scmp.eq.s32.totalorder %s22, 1
      %p61 = scmp.ne.s32.totalorder %s56, %s58
      %p62 = scmp.eq.s32.totalorder %s22, 0
      %p63 = por %p61, %p62
      %p64 = scmp.ne.s32.totalorder %s56, %s58
      %p65 = scmp.eq.s32.totalorder %s27, 1
      %p66 = por %p64, %p65
      %p67 = scmp.ne.s32.totalorder %s58, %s59
      %p68 = scmp.eq.s32.totalorder %s27, 0
      %p69 = por %p67, %p68
      %p70 = scmp.ne.s32.totalorder %s58, %s59
      %p71 = scmp.eq.s32.totalorder %s28, 1
      %p72 = por %p70, %p71
      %p74 = scmp.ne.s32.totalorder %s59, %s73
      %p75 = scmp.eq.s32.totalorder %s28, 0
      %p76 = por %p74, %p75
      %s78 = sadd.s32 %s77, 1
      %p81 = scmp.eq.s32.totalorder %s22, 1
      %p82 = scmp.ne.s32.totalorder %s77, %s79
      %p83 = scmp.eq.s32.totalorder %s22, 0
      %p84 = por %p82, %p83
      %p85 = scmp.ne.s32.totalorder %s77, %s79
      %p86 = scmp.eq.s32.totalorder %s27, 1
      %p87 = por %p85, %p86
      %p88 = scmp.ne.s32.totalorder %s79, %s80
      %p89 = scmp.eq.s32.totalorder %s27, 0
      %p90 = por %p88, %p89
      %p91 = scmp.ne.s32.totalorder %s79, %s80
      %p92 = scmp.eq.s32.totalorder %s28, 1
      %p93 = por %p91, %p92
      %p95 = scmp.ne.s32.totalorder %s80, %s94
      %p96 = scmp.eq.s32.totalorder %s28, 0
      %p97 = por %p95, %p96
      %s99 = sadd.s32 %s98, 1
      %p102 = scmp.eq.s32.totalorder %s22, 1
      %p103 = scmp.ne.s32.totalorder %s98, %s100
      %p104 = scmp.eq.s32.totalorder %s22, 0
      %p105 = por %p103, %p104
      %p106 = scmp.ne.s32.totalorder %s98, %s100
      %p107 = scmp.eq.s32.totalorder %s27, 1
      %p108 = por %p106, %p107
      %p109 = scmp.ne.s32.totalorder %s100, %s101
      %p110 = scmp.eq.s32.totalorder %s27, 0
      %p111 = por %p109, %p110
      %p112 = scmp.ne.s32.totalorder %s100, %s101
      %p113 = scmp.eq.s32.totalorder %s28, 1
      %p114 = por %p112, %p113
      %p116 = scmp.ne.s32.totalorder %s101, %s115
      %p117 = scmp.eq.s32.totalorder %s28, 0
      %p118 = por %p116, %p117
      %s120 = sadd.s32 %s119, 1
      %p123 = scmp.eq.s32.totalorder %s22, 1
      %p124 = scmp.ne.s32.totalorder %s119, %s121
      %p125 = scmp.eq.s32.totalorder %s22, 0
      %p126 = por %p124, %p125
      %p127 = scmp.ne.s32.totalorder %s119, %s121
      %p128 = scmp.eq.s32.totalorder %s27, 1
      %p129 = por %p127, %p128
      %p130 = scmp.ne.s32.totalorder %s121, %s122
      %p131 = scmp.eq.s32.totalorder %s27, 0
      %p132 = por %p130, %p131
      %p133 = scmp.ne.s32.totalorder %s121, %s122
      %p134 = scmp.eq.s32.totalorder %s28, 1
      %p135 = por %p133, %p134
      %p137 = scmp.ne.s32.totalorder %s122, %s136
      %p138 = scmp.eq.s32.totalorder %s28, 0
      %p139 = por %p137, %p138
      %s141 = sadd.s32 %s140, 1
      %p144 = scmp.eq.s32.totalorder %s22, 1
      %p145 = scmp.ne.s32.totalorder %s140, %s142
      %p146 = scmp.eq.s32.totalorder %s22, 0
      %p147 = por %p145, %p146
      %p148 = scmp.ne.s32.totalorder %s140, %s142
      %p149 = scmp.eq.s32.totalorder %s27, 1
      %p150 = por %p148, %p149
      %p151 = scmp.ne.s32.totalorder %s142, %s143
      %p152 = scmp.eq.s32.totalorder %s27, 0
      %p153 = por %p151, %p152
      %p154 = scmp.ne.s32.totalorder %s142, %s143
      %p155 = scmp.eq.s32.totalorder %s28, 1
      %p156 = por %p154, %p155
      %p158 = scmp.ne.s32.totalorder %s143, %s157
      %p159 = scmp.eq.s32.totalorder %s28, 0
      %p160 = por %p158, %p159
      %s162 = sadd.s32 %s161, 1
      %p165 = scmp.eq.s32.totalorder %s22, 1
      %p166 = scmp.ne.s32.totalorder %s161, %s163
      %p167 = scmp.eq.s32.totalorder %s22, 0
      %p168 = por %p166, %p167
      %p169 = scmp.ne.s32.totalorder %s161, %s163
      %p170 = scmp.eq.s32.totalorder %s27, 1
      %p171 = por %p169, %p170
      %p172 = scmp.ne.s32.totalorder %s163, %s164
      %p173 = scmp.eq.s32.totalorder %s27, 0
      %p174 = por %p172, %p173
      %p175 = scmp.ne.s32.totalorder %s163, %s164
      %p176 = scmp.eq.s32.totalorder %s28, 1
      %p177 = por %p175, %p176
      %p179 = scmp.ne.s32.totalorder %s164, %s178
      %p180 = scmp.eq.s32.totalorder %s28, 0
      %p181 = por %p179, %p180
      %s182 = ssub.s32 %s22, %s29
      %p183 = scmp.eq.s32.totalorder %s182, 0
      %s185 = sadd.s32 %s184, 1
      %s186 = scalar_select %p183, %s184, %s185
      %p189 = pneg %p183
      %p190 = scmp.eq.s32.totalorder %s22, 1
      %p191 = por %p189, %p190
      %p192 = scmp.ne.s32.totalorder %s184, %s187
      %p193 = scmp.eq.s32.totalorder %s22, 0
      %p194 = por %p192, %p193
      %p195 = scmp.ne.s32.totalorder %s184, %s187
      %p196 = scmp.eq.s32.totalorder %s27, 1
      %p197 = por %p195, %p196
      %p198 = scmp.ne.s32.totalorder %s187, %s188
      %p199 = scmp.eq.s32.totalorder %s27, 0
      %p200 = por %p198, %p199
      %p201 = scmp.ne.s32.totalorder %s187, %s188
      %p202 = scmp.eq.s32.totalorder %s28, 1
      %p203 = por %p201, %p202
      %p205 = scmp.ne.s32.totalorder %s188, %s204
      %p206 = scmp.eq.s32.totalorder %s28, 0
      %p207 = por %p205, %p206
      %p208 = scmp.le.s32.totalorder 1, %s22
      %p209 = scmp.lt.s32.totalorder %s22, 3
      %p210 = pnand %p208, %p209
      %p211 = pneg %p210
      // Predicated region
      $region9: #{tpu_custom_call.1} parent=5 // pred_check
        _
      $region10: #{tpu_custom_call.1} parent=5 // pred_check_branch
        %213 = sbr.rel (%p210) target = $region12
      $region11: #{tpu_custom_call.1} parent=5 // pred_region
        %s214 = ssub.s32 %s22, 1
        // Predicated region
        $region13: #{tpu_custom_call.1} parent=11 // pred_check
          %p215 = pneg %p69
        $region14: #{tpu_custom_call.1} parent=11 // pred_check_branch
          %217 = sbr.rel (%p215) target = $region16
        $region15: #{tpu_custom_call.1} parent=11 // pred_region
          %s219 = ssub.s32 2048, 2048
          %220 = vsyncadd [#allocation6], %s219
          %s221 = sshll.u32 [#allocation5], 4
          %s222 = int_to_ptr.vmem [resolvable:$true] %s221
          %227 = dma.hbm_to_vmem [thread:$0]  %s1, 2048, %s222, [#allocation6], 128, 128, 8
        $region16: #{tpu_custom_call.1} parent=11 // pred_fallthru
          _
        // Predicated region
        $region17: #{tpu_custom_call.1} parent=11 // pred_check
          %p228 = pneg %p90
        $region18: #{tpu_custom_call.1} parent=11 // pred_check_branch
          %230 = sbr.rel (%p228) target = $region20
        $region19: #{tpu_custom_call.1} parent=11 // pred_region
          %s232 = ssub.s32 8192, 8192
          %233 = vsyncadd [#allocation6], %s232
          %s234 = sshll.u32 [#allocation7], 4
          %s235 = int_to_ptr.vmem [resolvable:$true] %s234
          %240 = dma.hbm_to_vmem [thread:$0]  %s2, 8192, %s235, [#allocation6], 256, 256, 16
        $region20: #{tpu_custom_call.1} parent=11 // pred_fallthru
          _
        // Predicated region
        $region21: #{tpu_custom_call.1} parent=11 // pred_check
          %p241 = pneg %p111
        $region22: #{tpu_custom_call.1} parent=11 // pred_check_branch
          %243 = sbr.rel (%p241) target = $region24
        $region23: #{tpu_custom_call.1} parent=11 // pred_region
          %s245 = ssub.s32 8192, 8192
          %246 = vsyncadd [#allocation9], %s245
          %s247 = sshll.u32 [#allocation8], 4
          %s248 = int_to_ptr.vmem [resolvable:$true] %s247
          %253 = dma.hbm_to_vmem [thread:$0]  %s3, 8192, %s248, [#allocation9], 128, 128, 8
        $region24: #{tpu_custom_call.1} parent=11 // pred_fallthru
          _
        // Predicated region
        $region25: #{tpu_custom_call.1} parent=11 // pred_check
          %p254 = pneg %p132
        $region26: #{tpu_custom_call.1} parent=11 // pred_check_branch
          %256 = sbr.rel (%p254) target = $region28
        $region27: #{tpu_custom_call.1} parent=11 // pred_region
          %s258 = ssub.s32 2048, 2048
          %259 = vsyncadd [#allocation9], %s258
          %s260 = sshll.u32 [#allocation10], 4
          %s261 = int_to_ptr.vmem [resolvable:$true] %s260
          %266 = dma.hbm_to_vmem [thread:$0]  %s4, 2048, %s261, [#allocation9], 64, 64, 4
        $region28: #{tpu_custom_call.1} parent=11 // pred_fallthru
          _
        // Predicated region
        $region29: #{tpu_custom_call.1} parent=11 // pred_check
          %p267 = pneg %p153
        $region30: #{tpu_custom_call.1} parent=11 // pred_check_branch
          %269 = sbr.rel (%p267) target = $region32
        $region31: #{tpu_custom_call.1} parent=11 // pred_region
          %s271 = ssub.s32 1024, 1024
          %272 = vsyncadd [#allocation12], %s271
          %s273 = sshll.u32 [#allocation11], 4
          %s274 = int_to_ptr.vmem [resolvable:$true] %s273
          %279 = dma.hbm_to_vmem [thread:$0]  %s5, 1024, %s274, [#allocation12], 64, 64, 4
        $region32: #{tpu_custom_call.1} parent=11 // pred_fallthru
          _
        // Predicated region
        $region33: #{tpu_custom_call.1} parent=11 // pred_check
          %p280 = pneg %p174
        $region34: #{tpu_custom_call.1} parent=11 // pred_check_branch
          %282 = sbr.rel (%p280) target = $region36
        $region35: #{tpu_custom_call.1} parent=11 // pred_region
          _
        $region36: #{tpu_custom_call.1} parent=11 // pred_fallthru
          _
      $region12: #{tpu_custom_call.1} parent=5 // pred_fallthru
        _
      %p283 = scmp.lt.s32.totalorder %s22, 2
      // Predicated region
      $region37: #{tpu_custom_call.1} parent=5 // pred_check
        %p284 = pneg %p283
      $region38: #{tpu_custom_call.1} parent=5 // pred_check_branch
        %286 = sbr.rel (%p284) target = $region40
      $region39: #{tpu_custom_call.1} parent=5 // pred_region
        // Predicated region
        $region41: #{tpu_custom_call.1} parent=39 // pred_check
          %p287 = pneg %p42
        $region42: #{tpu_custom_call.1} parent=39 // pred_check_branch
          %289 = sbr.rel (%p287) target = $region44
        $region43: #{tpu_custom_call.1} parent=39 // pred_region
          %s290 = sand.u32 %s32, 1
          %s291 = scalar_lea.sflag [#allocation3], %s290
          %s292 = sand.u32 %s32, 1
          %s293 = smul.addr %s292, 16
          %s294 = scalar_lea.vmem [#allocation2], %s293
          %s295 = smul.u32 2, %s22
          %s297 = ssub.s32 256, 256
          %298 = vsyncadd %s291, %s297
          %s299 = smul.addr %s295, 128
          %s300 = scalar_lea.hbm %s0, %s299
          %s301 = sshll.u32 %s294, 4
          %s302 = int_to_ptr.vmem [resolvable:$true] %s301
          %307 = dma.hbm_to_vmem [thread:$0]  %s300, 256, %s302, %s291, 128, 128, 8
        $region44: #{tpu_custom_call.1} parent=39 // pred_fallthru
          _
      $region40: #{tpu_custom_call.1} parent=5 // pred_fallthru
        _
      %p308 = scmp.le.s32.totalorder 1, %s22
      %p309 = scmp.lt.s32.totalorder %s22, 3
      %p310 = pnand %p308, %p309
      %p311 = pneg %p310
      // Predicated region
      $region45: #{tpu_custom_call.1} parent=5 // pred_check
        _
      $region46: #{tpu_custom_call.1} parent=5 // pred_check_branch
        %313 = sbr.rel (%p310) target = $region48
      $region47: #{tpu_custom_call.1} parent=5 // pred_region
        %s314 = ssub.s32 %s22, 1
        %s315 = sand.u32 %s35, 1
        %s316 = scalar_lea.sflag [#allocation3], %s315
        %s317 = sand.u32 %s35, 1
        %s318 = smul.addr %s317, 16
        %s319 = scalar_lea.vmem [#allocation2], %s318
        // Predicated region
        $region49: #{tpu_custom_call.1} parent=47 // pred_check
          %p320 = pneg %p48
        $region50: #{tpu_custom_call.1} parent=47 // pred_check_branch
          %322 = sbr.rel (%p320) target = $region52
        $region51: #{tpu_custom_call.1} parent=47 // pred_region
          %323 = dma.done %s316, 256
        $region52: #{tpu_custom_call.1} parent=47 // pred_fallthru
          _
        // Predicated region
        $region53: #{tpu_custom_call.1} parent=47 // pred_check
          %p324 = pneg %p69
        $region54: #{tpu_custom_call.1} parent=47 // pred_check_branch
          %326 = sbr.rel (%p324) target = $region56
        $region55: #{tpu_custom_call.1} parent=47 // pred_region
          %327 = dma.done [#allocation6], 2048
        $region56: #{tpu_custom_call.1} parent=47 // pred_fallthru
          _
        // Predicated region
        $region57: #{tpu_custom_call.1} parent=47 // pred_check
          %p328 = pneg %p90
        $region58: #{tpu_custom_call.1} parent=47 // pred_check_branch
          %330 = sbr.rel (%p328) target = $region60
        $region59: #{tpu_custom_call.1} parent=47 // pred_region
          %331 = dma.done [#allocation6], 8192
        $region60: #{tpu_custom_call.1} parent=47 // pred_fallthru
          _
        // Predicated region
        $region61: #{tpu_custom_call.1} parent=47 // pred_check
          %p332 = pneg %p111
        $region62: #{tpu_custom_call.1} parent=47 // pred_check_branch
          %334 = sbr.rel (%p332) target = $region64
        $region63: #{tpu_custom_call.1} parent=47 // pred_region
          %335 = dma.done [#allocation9], 8192
        $region64: #{tpu_custom_call.1} parent=47 // pred_fallthru
          _
        // Predicated region
        $region65: #{tpu_custom_call.1} parent=47 // pred_check
          %p336 = pneg %p132
        $region66: #{tpu_custom_call.1} parent=47 // pred_check_branch
          %338 = sbr.rel (%p336) target = $region68
        $region67: #{tpu_custom_call.1} parent=47 // pred_region
          %339 = dma.done [#allocation9], 2048
        $region68: #{tpu_custom_call.1} parent=47 // pred_fallthru
          _
        // Predicated region
        $region69: #{tpu_custom_call.1} parent=47 // pred_check
          %p340 = pneg %p153
        $region70: #{tpu_custom_call.1} parent=47 // pred_check_branch
          %342 = sbr.rel (%p340) target = $region72
        $region71: #{tpu_custom_call.1} parent=47 // pred_region
          %343 = dma.done [#allocation12], 1024
        $region72: #{tpu_custom_call.1} parent=47 // pred_fallthru
          _
        %s344 = sand.u32 %s35, 1
        %s345 = scalar_lea.sflag [#allocation3], %s344
        %s346 = sand.u32 %s35, 1
        %s347 = smul.addr %s346, 16
        %s348 = scalar_lea.vmem [#allocation2], %s347
        %p349 = pneg %p48
        %p350 = pneg %p45
        %p351 = pneg %p69
        %p352 = pneg %p66
        %p353 = pneg %p90
        %p354 = pneg %p87
        %p355 = pneg %p111
        %p356 = pneg %p108
        %p357 = pneg %p132
        %p358 = pneg %p129
        %p359 = pneg %p153
        %p360 = pneg %p150
        %p361 = pneg %p174
        %p362 = pneg %p171
        %p363 = pneg %p200
        %p364 = pneg %p197
        %s365 = sand.u32 %s187, 1
        %s366 = scalar_lea.sflag [#allocation4], %s365
        %s367 = sand.u32 %s187, 1
        %s368 = smul.addr %s367, 16
        %s369 = scalar_lea.vmem [#allocation13], %s368
        %s370 = smul.u32 2, %s27
        %s371 = smul.u32 2, %s27
        %v373 = vld [vmem:[%s319] sm:$0xff]
        %v374 = vld [vmem:[%s319 + $0x8] sm:$0xff]
        %v375 = vpack.c.bf16 %v374, %v373
        %v376 = vld [vmem:[#allocation5] sm:$0xff]
        %v377 = vld [vmem:[#allocation5 + $0x8] sm:$0xff]
        %v378 = vld [vmem:[#allocation5 + $0x10] sm:$0xff]
        %v379 = vld [vmem:[#allocation5 + $0x18] sm:$0xff]
        %v380 = vld [vmem:[#allocation5 + $0x20] sm:$0xff]
        %v381 = vld [vmem:[#allocation5 + $0x28] sm:$0xff]
        %v382 = vld [vmem:[#allocation5 + $0x30] sm:$0xff]
        %v383 = vld [vmem:[#allocation5 + $0x38] sm:$0xff]
        %v384 = vld [vmem:[#allocation5 + $0x40] sm:$0xff]
        %v385 = vld [vmem:[#allocation5 + $0x48] sm:$0xff]
        %v386 = vld [vmem:[#allocation5 + $0x50] sm:$0xff]
        %v387 = vld [vmem:[#allocation5 + $0x58] sm:$0xff]
        %v388 = vld [vmem:[#allocation5 + $0x60] sm:$0xff]
        %v389 = vld [vmem:[#allocation5 + $0x68] sm:$0xff]
        %v390 = vld [vmem:[#allocation5 + $0x70] sm:$0xff]
        %v391 = vld [vmem:[#allocation5 + $0x78] sm:$0xff]
        %v392 = vld [vmem:[%s6] sm:$0x3]
        %v394 = vlaneseq
        %v395 = vshrl.u32 %v394, 7
        %v396 = vsub.s32 0, %v395
        %v397 = vrot.slane %v392, %v396
        %v398 = vlaneseq
        %v399 = vshrl.u32 %v398, 7
        %v400 = vsub.s32 1, %v399
        %v401 = vrot.slane %v392, %v400
        %v420 = vunpack.c.l.b16 %v376
        %v421 = vunpack.c.h.b16 %v376
        %v422 = vunpack.c.l.b16 %v377
        %v423 = vunpack.c.h.b16 %v377
        %v424 = vunpack.c.l.b16 %v378
        %v425 = vunpack.c.h.b16 %v378
        %v426 = vunpack.c.l.b16 %v379
        %v427 = vunpack.c.h.b16 %v379
        %v428 = vunpack.c.l.b16 %v380
        %v429 = vunpack.c.h.b16 %v380
        %v430 = vunpack.c.l.b16 %v381
        %v431 = vunpack.c.h.b16 %v381
        %v432 = vunpack.c.l.b16 %v382
        %v433 = vunpack.c.h.b16 %v382
        %v434 = vunpack.c.l.b16 %v383
        %v435 = vunpack.c.h.b16 %v383
        %v436 = vunpack.c.l.b16 %v384
        %v437 = vunpack.c.h.b16 %v384
        %v438 = vunpack.c.l.b16 %v385
        %v439 = vunpack.c.h.b16 %v385
        %v440 = vunpack.c.l.b16 %v386
        %v441 = vunpack.c.h.b16 %v386
        %v442 = vunpack.c.l.b16 %v387
        %v443 = vunpack.c.h.b16 %v387
        %v444 = vunpack.c.l.b16 %v388
        %v445 = vunpack.c.h.b16 %v388
        %v446 = vunpack.c.l.b16 %v389
        %v447 = vunpack.c.h.b16 %v389
        %v448 = vunpack.c.l.b16 %v390
        %v449 = vunpack.c.h.b16 %v390
        %v450 = vunpack.c.l.b16 %v391
        %v451 = vunpack.c.h.b16 %v391
        %v452 = vpack.c.b16 %v422, %v420
        %v453 = vpack.c.b16 %v423, %v421
        %v454 = vpack.c.b16 %v426, %v424
        %v455 = vpack.c.b16 %v427, %v425
        %v456 = vpack.c.b16 %v430, %v428
        %v457 = vpack.c.b16 %v431, %v429
        %v458 = vpack.c.b16 %v434, %v432
        %v459 = vpack.c.b16 %v435, %v433
        %v460 = vpack.c.b16 %v438, %v436
        %v461 = vpack.c.b16 %v439, %v437
        %v462 = vpack.c.b16 %v442, %v440
        %v463 = vpack.c.b16 %v443, %v441
        %v464 = vpack.c.b16 %v446, %v444
        %v465 = vpack.c.b16 %v447, %v445
        %v466 = vpack.c.b16 %v450, %v448
        %v467 = vpack.c.b16 %v451, %v449
        %484 = vmatprep.subr.bf16.mxu0 %v467
        %485 = vmatpush1.bf16.msra.mxu0 %v466
        %486 = vmatprep.subr.bf16.mxu0 %v465
        %487 = vmatpush1.bf16.msra.mxu0 %v464
        %488 = vmatprep.subr.bf16.mxu0 %v463
        %489 = vmatpush1.bf16.msra.mxu0 %v462
        %490 = vmatprep.subr.bf16.mxu0 %v461
        %491 = vmatpush1.bf16.msra.mxu0 %v460
        %492 = vmatprep.subr.bf16.mxu0 %v459
        %493 = vmatpush1.bf16.msra.mxu0 %v458
        %494 = vmatprep.subr.bf16.mxu0 %v457
        %495 = vmatpush1.bf16.msra.mxu0 %v456
        %496 = vmatprep.subr.bf16.mxu0 %v455
        %497 = vmatpush1.bf16.msra.mxu0 %v454
        %498 = vmatprep.subr.bf16.mxu0 %v453
        %499 = vmatpush1.bf16.msra.mxu0 %v452
        %500 = vmatprep.subr.bf16.mxu0 0
        %501 = vmatpush2.bf16.msra.mxu0 0
        %502 = vmatprep.subr.bf16.mxu0 0
        %503 = vmatpush2.bf16.msra.mxu0 0
        %504 = vmatprep.subr.bf16.mxu0 0
        %505 = vmatpush2.bf16.msra.mxu0 0
        %506 = vmatprep.subr.bf16.mxu0 0
        %507 = vmatpush2.bf16.msra.mxu0 0
        %508 = vmatprep.subr.bf16.mxu0 0
        %509 = vmatpush2.bf16.msra.mxu0 0
        %510 = vmatprep.subr.bf16.mxu0 0
        %511 = vmatpush2.bf16.msra.mxu0 0
        %512 = vmatprep.subr.bf16.mxu0 0
        %513 = vmatpush2.bf16.msra.mxu0 0
        %514 = vmatprep.subr.bf16.mxu0 0
        %515 = vmatpush2.bf16.msra.mxu0 0
        %516 = vmatprep.mubr.bf16.mxu0 0
        %517 = vmatmul.mubr.bf16.gmra.mxu0 %v375
        %v518 = vpop.f32.mrf.mxu0
        %v519 = vadd.f32 %v397, %v518
        %v520 = vpop.f32.mrf.mxu0
        %v521 = vadd.f32 %v401, %v520
        %v522 = vpop.f32.mrf.mxu0
        %v523 = vadd.f32 %v397, %v522
        %v524 = vpop.f32.mrf.mxu0
        %v525 = vadd.f32 %v401, %v524
        %526 = vdwg.mxu0
        %v527 = vmax.f32 %v519, 0.0
        %v528 = vmax.f32 %v521, 0.0
        %v529 = vmax.f32 %v523, 0.0
        %v530 = vmax.f32 %v525, 0.0
        %v531 = vpack.c.bf16 %v529, %v527
        %v532 = vpack.c.bf16 %v530, %v528
        %v533 = vld [vmem:[#allocation7] sm:$0xff]
        %v534 = vld [vmem:[#allocation7 + $0x8] sm:$0xff]
        %v535 = vld [vmem:[#allocation7 + $0x10] sm:$0xff]
        %v536 = vld [vmem:[#allocation7 + $0x18] sm:$0xff]
        %v537 = vld [vmem:[#allocation7 + $0x20] sm:$0xff]
        %v538 = vld [vmem:[#allocation7 + $0x28] sm:$0xff]
        %v539 = vld [vmem:[#allocation7 + $0x30] sm:$0xff]
        %v540 = vld [vmem:[#allocation7 + $0x38] sm:$0xff]
        %v541 = vld [vmem:[#allocation7 + $0x40] sm:$0xff]
        %v542 = vld [vmem:[#allocation7 + $0x48] sm:$0xff]
        %v543 = vld [vmem:[#allocation7 + $0x50] sm:$0xff]
        %v544 = vld [vmem:[#allocation7 + $0x58] sm:$0xff]
        %v545 = vld [vmem:[#allocation7 + $0x60] sm:$0xff]
        %v546 = vld [vmem:[#allocation7 + $0x68] sm:$0xff]
        %v547 = vld [vmem:[#allocation7 + $0x70] sm:$0xff]
        %v548 = vld [vmem:[#allocation7 + $0x78] sm:$0xff]
        %v549 = vld [vmem:[#allocation7 + $0x80] sm:$0xff]
        %v550 = vld [vmem:[#allocation7 + $0x88] sm:$0xff]
        %v551 = vld [vmem:[#allocation7 + $0x90] sm:$0xff]
        %v552 = vld [vmem:[#allocation7 + $0x98] sm:$0xff]
        %v553 = vld [vmem:[#allocation7 + $0xa0] sm:$0xff]
        %v554 = vld [vmem:[#allocation7 + $0xa8] sm:$0xff]
        %v555 = vld [vmem:[#allocation7 + $0xb0] sm:$0xff]
        %v556 = vld [vmem:[#allocation7 + $0xb8] sm:$0xff]
        %v557 = vld [vmem:[#allocation7 + $0xc0] sm:$0xff]
        %v558 = vld [vmem:[#allocation7 + $0xc8] sm:$0xff]
        %v559 = vld [vmem:[#allocation7 + $0xd0] sm:$0xff]
        %v560 = vld [vmem:[#allocation7 + $0xd8] sm:$0xff]
        %v561 = vld [vmem:[#allocation7 + $0xe0] sm:$0xff]
        %v562 = vld [vmem:[#allocation7 + $0xe8] sm:$0xff]
        %v563 = vld [vmem:[#allocation7 + $0xf0] sm:$0xff]
        %v564 = vld [vmem:[#allocation7 + $0xf8] sm:$0xff]
        %v565 = vld [vmem:[#allocation7 + $0x100] sm:$0xff]
        %v566 = vld [vmem:[#allocation7 + $0x108] sm:$0xff]
        %v567 = vld [vmem:[#allocation7 + $0x110] sm:$0xff]
        %v568 = vld [vmem:[#allocation7 + $0x118] sm:$0xff]
        %v569 = vld [vmem:[#allocation7 + $0x120] sm:$0xff]
        %v570 = vld [vmem:[#allocation7 + $0x128] sm:$0xff]
        %v571 = vld [vmem:[#allocation7 + $0x130] sm:$0xff]
        %v572 = vld [vmem:[#allocation7 + $0x138] sm:$0xff]
        %v573 = vld [vmem:[#allocation7 + $0x140] sm:$0xff]
        %v574 = vld [vmem:[#allocation7 + $0x148] sm:$0xff]
        %v575 = vld [vmem:[#allocation7 + $0x150] sm:$0xff]
        %v576 = vld [vmem:[#allocation7 + $0x158] sm:$0xff]
        %v577 = vld [vmem:[#allocation7 + $0x160] sm:$0xff]
        %v578 = vld [vmem:[#allocation7 + $0x168] sm:$0xff]
        %v579 = vld [vmem:[#allocation7 + $0x170] sm:$0xff]
        %v580 = vld [vmem:[#allocation7 + $0x178] sm:$0xff]
        %v581 = vld [vmem:[#allocation7 + $0x180] sm:$0xff]
        %v582 = vld [vmem:[#allocation7 + $0x188] sm:$0xff]
        %v583 = vld [vmem:[#allocation7 + $0x190] sm:$0xff]
        %v584 = vld [vmem:[#allocation7 + $0x198] sm:$0xff]
        %v585 = vld [vmem:[#allocation7 + $0x1a0] sm:$0xff]
        %v586 = vld [vmem:[#allocation7 + $0x1a8] sm:$0xff]
        %v587 = vld [vmem:[#allocation7 + $0x1b0] sm:$0xff]
        %v588 = vld [vmem:[#allocation7 + $0x1b8] sm:$0xff]
        %v589 = vld [vmem:[#allocation7 + $0x1c0] sm:$0xff]
        %v590 = vld [vmem:[#allocation7 + $0x1c8] sm:$0xff]
        %v591 = vld [vmem:[#allocation7 + $0x1d0] sm:$0xff]
        %v592 = vld [vmem:[#allocation7 + $0x1d8] sm:$0xff]
        %v593 = vld [vmem:[#allocation7 + $0x1e0] sm:$0xff]
        %v594 = vld [vmem:[#allocation7 + $0x1e8] sm:$0xff]
        %v595 = vld [vmem:[#allocation7 + $0x1f0] sm:$0xff]
        %v596 = vld [vmem:[#allocation7 + $0x1f8] sm:$0xff]
        %v597 = vld [vmem:[%s6 + $0x2] sm:$0xf]
        %v599 = vlaneseq
        %v600 = vshrl.u32 %v599, 7
        %v601 = vsub.s32 0, %v600
        %v602 = vrot.slane %v597, %v601
        %v603 = vlaneseq
        %v604 = vshrl.u32 %v603, 7
        %v605 = vsub.s32 1, %v604
        %v606 = vrot.slane %v597, %v605
        %v607 = vlaneseq
        %v608 = vshrl.u32 %v607, 7
        %v609 = vsub.s32 2, %v608
        %v610 = vrot.slane %v597, %v609
        %v611 = vlaneseq
        %v612 = vshrl.u32 %v611, 7
        %v613 = vsub.s32 3, %v612
        %v614 = vrot.slane %v597, %v613
        %v683 = vunpack.c.l.b16 %v533
        %v684 = vunpack.c.h.b16 %v533
        %v685 = vunpack.c.l.b16 %v534
        %v686 = vunpack.c.h.b16 %v534
        %v687 = vunpack.c.l.b16 %v535
        %v688 = vunpack.c.h.b16 %v535
        %v689 = vunpack.c.l.b16 %v536
        %v690 = vunpack.c.h.b16 %v536
        %v691 = vunpack.c.l.b16 %v537
        %v692 = vunpack.c.h.b16 %v537
        %v693 = vunpack.c.l.b16 %v538
        %v694 = vunpack.c.h.b16 %v538
        %v695 = vunpack.c.l.b16 %v539
        %v696 = vunpack.c.h.b16 %v539
        %v697 = vunpack.c.l.b16 %v540
        %v698 = vunpack.c.h.b16 %v540
        %v699 = vunpack.c.l.b16 %v541
        %v700 = vunpack.c.h.b16 %v541
        %v701 = vunpack.c.l.b16 %v542
        %v702 = vunpack.c.h.b16 %v542
        %v703 = vunpack.c.l.b16 %v543
        %v704 = vunpack.c.h.b16 %v543
        %v705 = vunpack.c.l.b16 %v544
        %v706 = vunpack.c.h.b16 %v544
        %v707 = vunpack.c.l.b16 %v545
        %v708 = vunpack.c.h.b16 %v545
        %v709 = vunpack.c.l.b16 %v546
        %v710 = vunpack.c.h.b16 %v546
        %v711 = vunpack.c.l.b16 %v547
        %v712 = vunpack.c.h.b16 %v547
        %v713 = vunpack.c.l.b16 %v548
        %v714 = vunpack.c.h.b16 %v548
        %v715 = vunpack.c.l.b16 %v549
        %v716 = vunpack.c.h.b16 %v549
        %v717 = vunpack.c.l.b16 %v550
        %v718 = vunpack.c.h.b16 %v550
        %v719 = vunpack.c.l.b16 %v551
        %v720 = vunpack.c.h.b16 %v551
        %v721 = vunpack.c.l.b16 %v552
        %v722 = vunpack.c.h.b16 %v552
        %v723 = vunpack.c.l.b16 %v553
        %v724 = vunpack.c.h.b16 %v553
        %v725 = vunpack.c.l.b16 %v554
        %v726 = vunpack.c.h.b16 %v554
        %v727 = vunpack.c.l.b16 %v555
        %v728 = vunpack.c.h.b16 %v555
        %v729 = vunpack.c.l.b16 %v556
        %v730 = vunpack.c.h.b16 %v556
        %v731 = vunpack.c.l.b16 %v557
        %v732 = vunpack.c.h.b16 %v557
        %v733 = vunpack.c.l.b16 %v558
        %v734 = vunpack.c.h.b16 %v558
        %v735 = vunpack.c.l.b16 %v559
        %v736 = vunpack.c.h.b16 %v559
        %v737 = vunpack.c.l.b16 %v560
        %v738 = vunpack.c.h.b16 %v560
        %v739 = vunpack.c.l.b16 %v561
        %v740 = vunpack.c.h.b16 %v561
        %v741 = vunpack.c.l.b16 %v562
        %v742 = vunpack.c.h.b16 %v562
        %v743 = vunpack.c.l.b16 %v563
        %v744 = vunpack.c.h.b16 %v563
        %v745 = vunpack.c.l.b16 %v564
        %v746 = vunpack.c.h.b16 %v564
        %v747 = vunpack.c.l.b16 %v565
        %v748 = vunpack.c.h.b16 %v565
        %v749 = vunpack.c.l.b16 %v566
        %v750 = vunpack.c.h.b16 %v566
        %v751 = vunpack.c.l.b16 %v567
        %v752 = vunpack.c.h.b16 %v567
        %v753 = vunpack.c.l.b16 %v568
        %v754 = vunpack.c.h.b16 %v568
        %v755 = vunpack.c.l.b16 %v569
        %v756 = vunpack.c.h.b16 %v569
        %v757 = vunpack.c.l.b16 %v570
        %v758 = vunpack.c.h.b16 %v570
        %v759 = vunpack.c.l.b16 %v571
        %v760 = vunpack.c.h.b16 %v571
        %v761 = vunpack.c.l.b16 %v572
        %v762 = vunpack.c.h.b16 %v572
        %v763 = vunpack.c.l.b16 %v573
        %v764 = vunpack.c.h.b16 %v573
        %v765 = vunpack.c.l.b16 %v574
        %v766 = vunpack.c.h.b16 %v574
        %v767 = vunpack.c.l.b16 %v575
        %v768 = vunpack.c.h.b16 %v575
        %v769 = vunpack.c.l.b16 %v576
        %v770 = vunpack.c.h.b16 %v576
        %v771 = vunpack.c.l.b16 %v577
        %v772 = vunpack.c.h.b16 %v577
        %v773 = vunpack.c.l.b16 %v578
        %v774 = vunpack.c.h.b16 %v578
        %v775 = vunpack.c.l.b16 %v579
        %v776 = vunpack.c.h.b16 %v579
        %v777 = vunpack.c.l.b16 %v580
        %v778 = vunpack.c.h.b16 %v580
        %v779 = vunpack.c.l.b16 %v581
        %v780 = vunpack.c.h.b16 %v581
        %v781 = vunpack.c.l.b16 %v582
        %v782 = vunpack.c.h.b16 %v582
        %v783 = vunpack.c.l.b16 %v583
        %v784 = vunpack.c.h.b16 %v583
        %v785 = vunpack.c.l.b16 %v584
        %v786 = vunpack.c.h.b16 %v584
        %v787 = vunpack.c.l.b16 %v585
        %v788 = vunpack.c.h.b16 %v585
        %v789 = vunpack.c.l.b16 %v586
        %v790 = vunpack.c.h.b16 %v586
        %v791 = vunpack.c.l.b16 %v587
        %v792 = vunpack.c.h.b16 %v587
        %v793 = vunpack.c.l.b16 %v588
        %v794 = vunpack.c.h.b16 %v588
        %v795 = vunpack.c.l.b16 %v589
        %v796 = vunpack.c.h.b16 %v589
        %v797 = vunpack.c.l.b16 %v590
        %v798 = vunpack.c.h.b16 %v590
        %v799 = vunpack.c.l.b16 %v591
        %v800 = vunpack.c.h.b16 %v591
        %v801 = vunpack.c.l.b16 %v592
        %v802 = vunpack.c.h.b16 %v592
        %v803 = vunpack.c.l.b16 %v593
        %v804 = vunpack.c.h.b16 %v593
        %v805 = vunpack.c.l.b16 %v594
        %v806 = vunpack.c.h.b16 %v594
        %v807 = vunpack.c.l.b16 %v595
        %v808 = vunpack.c.h.b16 %v595
        %v809 = vunpack.c.l.b16 %v596
        %v810 = vunpack.c.h.b16 %v596
        %v811 = vpack.c.b16 %v687, %v683
        %v812 = vpack.c.b16 %v688, %v684
        %v813 = vpack.c.b16 %v689, %v685
        %v814 = vpack.c.b16 %v690, %v686
        %v815 = vpack.c.b16 %v695, %v691
        %v816 = vpack.c.b16 %v696, %v692
        %v817 = vpack.c.b16 %v697, %v693
        %v818 = vpack.c.b16 %v698, %v694
        %v819 = vpack.c.b16 %v703, %v699
        %v820 = vpack.c.b16 %v704, %v700
        %v821 = vpack.c.b16 %v705, %v701
        %v822 = vpack.c.b16 %v706, %v702
        %v823 = vpack.c.b16 %v711, %v707
        %v824 = vpack.c.b16 %v712, %v708
        %v825 = vpack.c.b16 %v713, %v709
        %v826 = vpack.c.b16 %v714, %v710
        %v827 = vpack.c.b16 %v719, %v715
        %v828 = vpack.c.b16 %v720, %v716
        %v829 = vpack.c.b16 %v721, %v717
        %v830 = vpack.c.b16 %v722, %v718
        %v831 = vpack.c.b16 %v727, %v723
        %v832 = vpack.c.b16 %v728, %v724
        %v833 = vpack.c.b16 %v729, %v725
        %v834 = vpack.c.b16 %v730, %v726
        %v835 = vpack.c.b16 %v735, %v731
        %v836 = vpack.c.b16 %v736, %v732
        %v837 = vpack.c.b16 %v737, %v733
        %v838 = vpack.c.b16 %v738, %v734
        %v839 = vpack.c.b16 %v743, %v739
        %v840 = vpack.c.b16 %v744, %v740
        %v841 = vpack.c.b16 %v745, %v741
        %v842 = vpack.c.b16 %v746, %v742
        %v843 = vpack.c.b16 %v751, %v747
        %v844 = vpack.c.b16 %v752, %v748
        %v845 = vpack.c.b16 %v753, %v749
        %v846 = vpack.c.b16 %v754, %v750
        %v847 = vpack.c.b16 %v759, %v755
        %v848 = vpack.c.b16 %v760, %v756
        %v849 = vpack.c.b16 %v761, %v757
        %v850 = vpack.c.b16 %v762, %v758
        %v851 = vpack.c.b16 %v767, %v763
        %v852 = vpack.c.b16 %v768, %v764
        %v853 = vpack.c.b16 %v769, %v765
        %v854 = vpack.c.b16 %v770, %v766
        %v855 = vpack.c.b16 %v775, %v771
        %v856 = vpack.c.b16 %v776, %v772
        %v857 = vpack.c.b16 %v777, %v773
        %v858 = vpack.c.b16 %v778, %v774
        %v859 = vpack.c.b16 %v783, %v779
        %v860 = vpack.c.b16 %v784, %v780
        %v861 = vpack.c.b16 %v785, %v781
        %v862 = vpack.c.b16 %v786, %v782
        %v863 = vpack.c.b16 %v791, %v787
        %v864 = vpack.c.b16 %v792, %v788
        %v865 = vpack.c.b16 %v793, %v789
        %v866 = vpack.c.b16 %v794, %v790
        %v867 = vpack.c.b16 %v799, %v795
        %v868 = vpack.c.b16 %v800, %v796
        %v869 = vpack.c.b16 %v801, %v797
        %v870 = vpack.c.b16 %v802, %v798
        %v871 = vpack.c.b16 %v807, %v803
        %v872 = vpack.c.b16 %v808, %v804
        %v873 = vpack.c.b16 %v809, %v805
        %v874 = vpack.c.b16 %v810, %v806
        %939 = vmatprep.subr.bf16.mxu0 %v840
        %940 = vmatpush1.bf16.msra.mxu0 %v839
        %941 = vmatprep.subr.bf16.mxu0 %v836
        %942 = vmatpush1.bf16.msra.mxu0 %v835
        %943 = vmatprep.subr.bf16.mxu0 %v832
        %944 = vmatpush1.bf16.msra.mxu0 %v831
        %945 = vmatprep.subr.bf16.mxu0 %v828
        %946 = vmatpush1.bf16.msra.mxu0 %v827
        %947 = vmatprep.subr.bf16.mxu0 %v824
        %948 = vmatpush1.bf16.msra.mxu0 %v823
        %949 = vmatprep.subr.bf16.mxu0 %v820
        %950 = vmatpush1.bf16.msra.mxu0 %v819
        %951 = vmatprep.subr.bf16.mxu0 %v816
        %952 = vmatpush1.bf16.msra.mxu0 %v815
        %953 = vmatprep.subr.bf16.mxu0 %v812
        %954 = vmatpush1.bf16.msra.mxu0 %v811
        %955 = vmatprep.subr.bf16.mxu0 %v872
        %956 = vmatpush2.bf16.msra.mxu0 %v871
        %957 = vmatprep.subr.bf16.mxu0 %v868
        %958 = vmatpush2.bf16.msra.mxu0 %v867
        %959 = vmatprep.subr.bf16.mxu0 %v864
        %960 = vmatpush2.bf16.msra.mxu0 %v863
        %961 = vmatprep.subr.bf16.mxu0 %v860
        %962 = vmatpush2.bf16.msra.mxu0 %v859
        %963 = vmatprep.subr.bf16.mxu0 %v856
        %964 = vmatpush2.bf16.msra.mxu0 %v855
        %965 = vmatprep.subr.bf16.mxu0 %v852
        %966 = vmatpush2.bf16.msra.mxu0 %v851
        %967 = vmatprep.subr.bf16.mxu0 %v848
        %968 = vmatpush2.bf16.msra.mxu0 %v847
        %969 = vmatprep.subr.bf16.mxu0 %v844
        %970 = vmatpush2.bf16.msra.mxu0 %v843
        %971 = vmatprep.mubr.bf16.mxu0 %v532
        %972 = vmatmul.mubr.bf16.gmra.mxu0 %v531
        %v973 = vpop.f32.mrf.mxu0
        %v974 = vadd.f32 %v602, %v973
        %v975 = vpop.f32.mrf.mxu0
        %v976 = vadd.f32 %v606, %v975
        %v977 = vpop.f32.mrf.mxu0
        %v978 = vadd.f32 %v602, %v977
        %v979 = vpop.f32.mrf.mxu0
        %v980 = vadd.f32 %v606, %v979
        %981 = vdwg.mxu0
        %982 = vmatprep.subr.bf16.mxu0 %v842
        %983 = vmatpush1.bf16.msra.mxu0 %v841
        %984 = vmatprep.subr.bf16.mxu0 %v838
        %985 = vmatpush1.bf16.msra.mxu0 %v837
        %986 = vmatprep.subr.bf16.mxu0 %v834
        %987 = vmatpush1.bf16.msra.mxu0 %v833
        %988 = vmatprep.subr.bf16.mxu0 %v830
        %989 = vmatpush1.bf16.msra.mxu0 %v829
        %990 = vmatprep.subr.bf16.mxu0 %v826
        %991 = vmatpush1.bf16.msra.mxu0 %v825
        %992 = vmatprep.subr.bf16.mxu0 %v822
        %993 = vmatpush1.bf16.msra.mxu0 %v821
        %994 = vmatprep.subr.bf16.mxu0 %v818
        %995 = vmatpush1.bf16.msra.mxu0 %v817
        %996 = vmatprep.subr.bf16.mxu0 %v814
        %997 = vmatpush1.bf16.msra.mxu0 %v813
        %998 = vmatprep.subr.bf16.mxu0 %v874
        %999 = vmatpush2.bf16.msra.mxu0 %v873
        %1000 = vmatprep.subr.bf16.mxu0 %v870
        %1001 = vmatpush2.bf16.msra.mxu0 %v869
        %1002 = vmatprep.subr.bf16.mxu0 %v866
        %1003 = vmatpush2.bf16.msra.mxu0 %v865
        %1004 = vmatprep.subr.bf16.mxu0 %v862
        %1005 = vmatpush2.bf16.msra.mxu0 %v861
        %1006 = vmatprep.subr.bf16.mxu0 %v858
        %1007 = vmatpush2.bf16.msra.mxu0 %v857
        %1008 = vmatprep.subr.bf16.mxu0 %v854
        %1009 = vmatpush2.bf16.msra.mxu0 %v853
        %1010 = vmatprep.subr.bf16.mxu0 %v850
        %1011 = vmatpush2.bf16.msra.mxu0 %v849
        %1012 = vmatprep.subr.bf16.mxu0 %v846
        %1013 = vmatpush2.bf16.msra.mxu0 %v845
        %1014 = vmatprep.mubr.bf16.mxu0 %v532
        %1015 = vmatmul.mubr.bf16.gmra.mxu0 %v531
        %v1016 = vpop.f32.mrf.mxu0
        %v1017 = vadd.f32 %v610, %v1016
        %v1018 = vpop.f32.mrf.mxu0
        %v1019 = vadd.f32 %v614, %v1018
        %v1020 = vpop.f32.mrf.mxu0
        %v1021 = vadd.f32 %v610, %v1020
        %v1022 = vpop.f32.mrf.mxu0
        %v1023 = vadd.f32 %v614, %v1022
        %1024 = vdwg.mxu0
        %v1025 = vmax.f32 %v974, 0.0
        %v1026 = vmax.f32 %v976, 0.0
        %v1027 = vmax.f32 %v1017, 0.0
        %v1028 = vmax.f32 %v1019, 0.0
        %v1029 = vmax.f32 %v978, 0.0
        %v1030 = vmax.f32 %v980, 0.0
        %v1031 = vmax.f32 %v1021, 0.0
        %v1032 = vmax.f32 %v1023, 0.0
        %v1033 = vpack.c.bf16 %v1029, %v1025
        %v1034 = vpack.c.bf16 %v1030, %v1026
        %v1035 = vpack.c.bf16 %v1031, %v1027
        %v1036 = vpack.c.bf16 %v1032, %v1028
        %v1037 = vld [vmem:[#allocation8] sm:$0xff]
        %v1038 = vld [vmem:[#allocation8 + $0x8] sm:$0xff]
        %v1039 = vld [vmem:[#allocation8 + $0x10] sm:$0xff]
        %v1040 = vld [vmem:[#allocation8 + $0x18] sm:$0xff]
        %v1041 = vld [vmem:[#allocation8 + $0x20] sm:$0xff]
        %v1042 = vld [vmem:[#allocation8 + $0x28] sm:$0xff]
        %v1043 = vld [vmem:[#allocation8 + $0x30] sm:$0xff]
        %v1044 = vld [vmem:[#allocation8 + $0x38] sm:$0xff]
        %v1045 = vld [vmem:[#allocation8 + $0x40] sm:$0xff]
        %v1046 = vld [vmem:[#allocation8 + $0x48] sm:$0xff]
        %v1047 = vld [vmem:[#allocation8 + $0x50] sm:$0xff]
        %v1048 = vld [vmem:[#allocation8 + $0x58] sm:$0xff]
        %v1049 = vld [vmem:[#allocation8 + $0x60] sm:$0xff]
        %v1050 = vld [vmem:[#allocation8 + $0x68] sm:$0xff]
        %v1051 = vld [vmem:[#allocation8 + $0x70] sm:$0xff]
        %v1052 = vld [vmem:[#allocation8 + $0x78] sm:$0xff]
        %v1053 = vld [vmem:[#allocation8 + $0x80] sm:$0xff]
        %v1054 = vld [vmem:[#allocation8 + $0x88] sm:$0xff]
        %v1055 = vld [vmem:[#allocation8 + $0x90] sm:$0xff]
        %v1056 = vld [vmem:[#allocation8 + $0x98] sm:$0xff]
        %v1057 = vld [vmem:[#allocation8 + $0xa0] sm:$0xff]
        %v1058 = vld [vmem:[#allocation8 + $0xa8] sm:$0xff]
        %v1059 = vld [vmem:[#allocation8 + $0xb0] sm:$0xff]
        %v1060 = vld [vmem:[#allocation8 + $0xb8] sm:$0xff]
        %v1061 = vld [vmem:[#allocation8 + $0xc0] sm:$0xff]
        %v1062 = vld [vmem:[#allocation8 + $0xc8] sm:$0xff]
        %v1063 = vld [vmem:[#allocation8 + $0xd0] sm:$0xff]
        %v1064 = vld [vmem:[#allocation8 + $0xd8] sm:$0xff]
        %v1065 = vld [vmem:[#allocation8 + $0xe0] sm:$0xff]
        %v1066 = vld [vmem:[#allocation8 + $0xe8] sm:$0xff]
        %v1067 = vld [vmem:[#allocation8 + $0xf0] sm:$0xff]
        %v1068 = vld [vmem:[#allocation8 + $0xf8] sm:$0xff]
        %v1069 = vld [vmem:[#allocation8 + $0x100] sm:$0xff]
        %v1070 = vld [vmem:[#allocation8 + $0x108] sm:$0xff]
        %v1071 = vld [vmem:[#allocation8 + $0x110] sm:$0xff]
        %v1072 = vld [vmem:[#allocation8 + $0x118] sm:$0xff]
        %v1073 = vld [vmem:[#allocation8 + $0x120] sm:$0xff]
        %v1074 = vld [vmem:[#allocation8 + $0x128] sm:$0xff]
        %v1075 = vld [vmem:[#allocation8 + $0x130] sm:$0xff]
        %v1076 = vld [vmem:[#allocation8 + $0x138] sm:$0xff]
        %v1077 = vld [vmem:[#allocation8 + $0x140] sm:$0xff]
        %v1078 = vld [vmem:[#allocation8 + $0x148] sm:$0xff]
        %v1079 = vld [vmem:[#allocation8 + $0x150] sm:$0xff]
        %v1080 = vld [vmem:[#allocation8 + $0x158] sm:$0xff]
        %v1081 = vld [vmem:[#allocation8 + $0x160] sm:$0xff]
        %v1082 = vld [vmem:[#allocation8 + $0x168] sm:$0xff]
        %v1083 = vld [vmem:[#allocation8 + $0x170] sm:$0xff]
        %v1084 = vld [vmem:[#allocation8 + $0x178] sm:$0xff]
        %v1085 = vld [vmem:[#allocation8 + $0x180] sm:$0xff]
        %v1086 = vld [vmem:[#allocation8 + $0x188] sm:$0xff]
        %v1087 = vld [vmem:[#allocation8 + $0x190] sm:$0xff]
        %v1088 = vld [vmem:[#allocation8 + $0x198] sm:$0xff]
        %v1089 = vld [vmem:[#allocation8 + $0x1a0] sm:$0xff]
        %v1090 = vld [vmem:[#allocation8 + $0x1a8] sm:$0xff]
        %v1091 = vld [vmem:[#allocation8 + $0x1b0] sm:$0xff]
        %v1092 = vld [vmem:[#allocation8 + $0x1b8] sm:$0xff]
        %v1093 = vld [vmem:[#allocation8 + $0x1c0] sm:$0xff]
        %v1094 = vld [vmem:[#allocation8 + $0x1c8] sm:$0xff]
        %v1095 = vld [vmem:[#allocation8 + $0x1d0] sm:$0xff]
        %v1096 = vld [vmem:[#allocation8 + $0x1d8] sm:$0xff]
        %v1097 = vld [vmem:[#allocation8 + $0x1e0] sm:$0xff]
        %v1098 = vld [vmem:[#allocation8 + $0x1e8] sm:$0xff]
        %v1099 = vld [vmem:[#allocation8 + $0x1f0] sm:$0xff]
        %v1100 = vld [vmem:[#allocation8 + $0x1f8] sm:$0xff]
        %v1101 = vld [vmem:[%s6 + $0x6] sm:$0x3]
        %v1103 = vlaneseq
        %v1104 = vshrl.u32 %v1103, 7
        %v1105 = vsub.s32 0, %v1104
        %v1106 = vrot.slane %v1101, %v1105
        %v1107 = vlaneseq
        %v1108 = vshrl.u32 %v1107, 7
        %v1109 = vsub.s32 1, %v1108
        %v1110 = vrot.slane %v1101, %v1109
        %v1177 = vunpack.c.l.b16 %v1037
        %v1178 = vunpack.c.h.b16 %v1037
        %v1179 = vunpack.c.l.b16 %v1038
        %v1180 = vunpack.c.h.b16 %v1038
        %v1181 = vunpack.c.l.b16 %v1039
        %v1182 = vunpack.c.h.b16 %v1039
        %v1183 = vunpack.c.l.b16 %v1040
        %v1184 = vunpack.c.h.b16 %v1040
        %v1185 = vunpack.c.l.b16 %v1041
        %v1186 = vunpack.c.h.b16 %v1041
        %v1187 = vunpack.c.l.b16 %v1042
        %v1188 = vunpack.c.h.b16 %v1042
        %v1189 = vunpack.c.l.b16 %v1043
        %v1190 = vunpack.c.h.b16 %v1043
        %v1191 = vunpack.c.l.b16 %v1044
        %v1192 = vunpack.c.h.b16 %v1044
        %v1193 = vunpack.c.l.b16 %v1045
        %v1194 = vunpack.c.h.b16 %v1045
        %v1195 = vunpack.c.l.b16 %v1046
        %v1196 = vunpack.c.h.b16 %v1046
        %v1197 = vunpack.c.l.b16 %v1047
        %v1198 = vunpack.c.h.b16 %v1047
        %v1199 = vunpack.c.l.b16 %v1048
        %v1200 = vunpack.c.h.b16 %v1048
        %v1201 = vunpack.c.l.b16 %v1049
        %v1202 = vunpack.c.h.b16 %v1049
        %v1203 = vunpack.c.l.b16 %v1050
        %v1204 = vunpack.c.h.b16 %v1050
        %v1205 = vunpack.c.l.b16 %v1051
        %v1206 = vunpack.c.h.b16 %v1051
        %v1207 = vunpack.c.l.b16 %v1052
        %v1208 = vunpack.c.h.b16 %v1052
        %v1209 = vunpack.c.l.b16 %v1053
        %v1210 = vunpack.c.h.b16 %v1053
        %v1211 = vunpack.c.l.b16 %v1054
        %v1212 = vunpack.c.h.b16 %v1054
        %v1213 = vunpack.c.l.b16 %v1055
        %v1214 = vunpack.c.h.b16 %v1055
        %v1215 = vunpack.c.l.b16 %v1056
        %v1216 = vunpack.c.h.b16 %v1056
        %v1217 = vunpack.c.l.b16 %v1057
        %v1218 = vunpack.c.h.b16 %v1057
        %v1219 = vunpack.c.l.b16 %v1058
        %v1220 = vunpack.c.h.b16 %v1058
        %v1221 = vunpack.c.l.b16 %v1059
        %v1222 = vunpack.c.h.b16 %v1059
        %v1223 = vunpack.c.l.b16 %v1060
        %v1224 = vunpack.c.h.b16 %v1060
        %v1225 = vunpack.c.l.b16 %v1061
        %v1226 = vunpack.c.h.b16 %v1061
        %v1227 = vunpack.c.l.b16 %v1062
        %v1228 = vunpack.c.h.b16 %v1062
        %v1229 = vunpack.c.l.b16 %v1063
        %v1230 = vunpack.c.h.b16 %v1063
        %v1231 = vunpack.c.l.b16 %v1064
        %v1232 = vunpack.c.h.b16 %v1064
        %v1233 = vunpack.c.l.b16 %v1065
        %v1234 = vunpack.c.h.b16 %v1065
        %v1235 = vunpack.c.l.b16 %v1066
        %v1236 = vunpack.c.h.b16 %v1066
        %v1237 = vunpack.c.l.b16 %v1067
        %v1238 = vunpack.c.h.b16 %v1067
        %v1239 = vunpack.c.l.b16 %v1068
        %v1240 = vunpack.c.h.b16 %v1068
        %v1241 = vunpack.c.l.b16 %v1069
        %v1242 = vunpack.c.h.b16 %v1069
        %v1243 = vunpack.c.l.b16 %v1070
        %v1244 = vunpack.c.h.b16 %v1070
        %v1245 = vunpack.c.l.b16 %v1071
        %v1246 = vunpack.c.h.b16 %v1071
        %v1247 = vunpack.c.l.b16 %v1072
        %v1248 = vunpack.c.h.b16 %v1072
        %v1249 = vunpack.c.l.b16 %v1073
        %v1250 = vunpack.c.h.b16 %v1073
        %v1251 = vunpack.c.l.b16 %v1074
        %v1252 = vunpack.c.h.b16 %v1074
        %v1253 = vunpack.c.l.b16 %v1075
        %v1254 = vunpack.c.h.b16 %v1075
        %v1255 = vunpack.c.l.b16 %v1076
        %v1256 = vunpack.c.h.b16 %v1076
        %v1257 = vunpack.c.l.b16 %v1077
        %v1258 = vunpack.c.h.b16 %v1077
        %v1259 = vunpack.c.l.b16 %v1078
        %v1260 = vunpack.c.h.b16 %v1078
        %v1261 = vunpack.c.l.b16 %v1079
        %v1262 = vunpack.c.h.b16 %v1079
        %v1263 = vunpack.c.l.b16 %v1080
        %v1264 = vunpack.c.h.b16 %v1080
        %v1265 = vunpack.c.l.b16 %v1081
        %v1266 = vunpack.c.h.b16 %v1081
        %v1267 = vunpack.c.l.b16 %v1082
        %v1268 = vunpack.c.h.b16 %v1082
        %v1269 = vunpack.c.l.b16 %v1083
        %v1270 = vunpack.c.h.b16 %v1083
        %v1271 = vunpack.c.l.b16 %v1084
        %v1272 = vunpack.c.h.b16 %v1084
        %v1273 = vunpack.c.l.b16 %v1085
        %v1274 = vunpack.c.h.b16 %v1085
        %v1275 = vunpack.c.l.b16 %v1086
        %v1276 = vunpack.c.h.b16 %v1086
        %v1277 = vunpack.c.l.b16 %v1087
        %v1278 = vunpack.c.h.b16 %v1087
        %v1279 = vunpack.c.l.b16 %v1088
        %v1280 = vunpack.c.h.b16 %v1088
        %v1281 = vunpack.c.l.b16 %v1089
        %v1282 = vunpack.c.h.b16 %v1089
        %v1283 = vunpack.c.l.b16 %v1090
        %v1284 = vunpack.c.h.b16 %v1090
        %v1285 = vunpack.c.l.b16 %v1091
        %v1286 = vunpack.c.h.b16 %v1091
        %v1287 = vunpack.c.l.b16 %v1092
        %v1288 = vunpack.c.h.b16 %v1092
        %v1289 = vunpack.c.l.b16 %v1093
        %v1290 = vunpack.c.h.b16 %v1093
        %v1291 = vunpack.c.l.b16 %v1094
        %v1292 = vunpack.c.h.b16 %v1094
        %v1293 = vunpack.c.l.b16 %v1095
        %v1294 = vunpack.c.h.b16 %v1095
        %v1295 = vunpack.c.l.b16 %v1096
        %v1296 = vunpack.c.h.b16 %v1096
        %v1297 = vunpack.c.l.b16 %v1097
        %v1298 = vunpack.c.h.b16 %v1097
        %v1299 = vunpack.c.l.b16 %v1098
        %v1300 = vunpack.c.h.b16 %v1098
        %v1301 = vunpack.c.l.b16 %v1099
        %v1302 = vunpack.c.h.b16 %v1099
        %v1303 = vunpack.c.l.b16 %v1100
        %v1304 = vunpack.c.h.b16 %v1100
        %v1305 = vpack.c.b16 %v1179, %v1177
        %v1306 = vpack.c.b16 %v1180, %v1178
        %v1307 = vpack.c.b16 %v1183, %v1181
        %v1308 = vpack.c.b16 %v1184, %v1182
        %v1309 = vpack.c.b16 %v1187, %v1185
        %v1310 = vpack.c.b16 %v1188, %v1186
        %v1311 = vpack.c.b16 %v1191, %v1189
        %v1312 = vpack.c.b16 %v1192, %v1190
        %v1313 = vpack.c.b16 %v1195, %v1193
        %v1314 = vpack.c.b16 %v1196, %v1194
        %v1315 = vpack.c.b16 %v1199, %v1197
        %v1316 = vpack.c.b16 %v1200, %v1198
        %v1317 = vpack.c.b16 %v1203, %v1201
        %v1318 = vpack.c.b16 %v1204, %v1202
        %v1319 = vpack.c.b16 %v1207, %v1205
        %v1320 = vpack.c.b16 %v1208, %v1206
        %v1321 = vpack.c.b16 %v1211, %v1209
        %v1322 = vpack.c.b16 %v1212, %v1210
        %v1323 = vpack.c.b16 %v1215, %v1213
        %v1324 = vpack.c.b16 %v1216, %v1214
        %v1325 = vpack.c.b16 %v1219, %v1217
        %v1326 = vpack.c.b16 %v1220, %v1218
        %v1327 = vpack.c.b16 %v1223, %v1221
        %v1328 = vpack.c.b16 %v1224, %v1222
        %v1329 = vpack.c.b16 %v1227, %v1225
        %v1330 = vpack.c.b16 %v1228, %v1226
        %v1331 = vpack.c.b16 %v1231, %v1229
        %v1332 = vpack.c.b16 %v1232, %v1230
        %v1333 = vpack.c.b16 %v1235, %v1233
        %v1334 = vpack.c.b16 %v1236, %v1234
        %v1335 = vpack.c.b16 %v1239, %v1237
        %v1336 = vpack.c.b16 %v1240, %v1238
        %v1337 = vpack.c.b16 %v1243, %v1241
        %v1338 = vpack.c.b16 %v1244, %v1242
        %v1339 = vpack.c.b16 %v1247, %v1245
        %v1340 = vpack.c.b16 %v1248, %v1246
        %v1341 = vpack.c.b16 %v1251, %v1249
        %v1342 = vpack.c.b16 %v1252, %v1250
        %v1343 = vpack.c.b16 %v1255, %v1253
        %v1344 = vpack.c.b16 %v1256, %v1254
        %v1345 = vpack.c.b16 %v1259, %v1257
        %v1346 = vpack.c.b16 %v1260, %v1258
        %v1347 = vpack.c.b16 %v1263, %v1261
        %v1348 = vpack.c.b16 %v1264, %v1262
        %v1349 = vpack.c.b16 %v1267, %v1265
        %v1350 = vpack.c.b16 %v1268, %v1266
        %v1351 = vpack.c.b16 %v1271, %v1269
        %v1352 = vpack.c.b16 %v1272, %v1270
        %v1353 = vpack.c.b16 %v1275, %v1273
        %v1354 = vpack.c.b16 %v1276, %v1274
        %v1355 = vpack.c.b16 %v1279, %v1277
        %v1356 = vpack.c.b16 %v1280, %v1278
        %v1357 = vpack.c.b16 %v1283, %v1281
        %v1358 = vpack.c.b16 %v1284, %v1282
        %v1359 = vpack.c.b16 %v1287, %v1285
        %v1360 = vpack.c.b16 %v1288, %v1286
        %v1361 = vpack.c.b16 %v1291, %v1289
        %v1362 = vpack.c.b16 %v1292, %v1290
        %v1363 = vpack.c.b16 %v1295, %v1293
        %v1364 = vpack.c.b16 %v1296, %v1294
        %v1365 = vpack.c.b16 %v1299, %v1297
        %v1366 = vpack.c.b16 %v1300, %v1298
        %v1367 = vpack.c.b16 %v1303, %v1301
        %v1368 = vpack.c.b16 %v1304, %v1302
        %1433 = vmatprep.subr.bf16.mxu0 %v1320
        %1434 = vmatpush1.bf16.msra.mxu0 %v1319
        %1435 = vmatprep.subr.bf16.mxu0 %v1318
        %1436 = vmatpush1.bf16.msra.mxu0 %v1317
        %1437 = vmatprep.subr.bf16.mxu0 %v1316
        %1438 = vmatpush1.bf16.msra.mxu0 %v1315
        %1439 = vmatprep.subr.bf16.mxu0 %v1314
        %1440 = vmatpush1.bf16.msra.mxu0 %v1313
        %1441 = vmatprep.subr.bf16.mxu0 %v1312
        %1442 = vmatpush1.bf16.msra.mxu0 %v1311
        %1443 = vmatprep.subr.bf16.mxu0 %v1310
        %1444 = vmatpush1.bf16.msra.mxu0 %v1309
        %1445 = vmatprep.subr.bf16.mxu0 %v1308
        %1446 = vmatpush1.bf16.msra.mxu0 %v1307
        %1447 = vmatprep.subr.bf16.mxu0 %v1306
        %1448 = vmatpush1.bf16.msra.mxu0 %v1305
        %1449 = vmatprep.subr.bf16.mxu0 %v1336
        %1450 = vmatpush2.bf16.msra.mxu0 %v1335
        %1451 = vmatprep.subr.bf16.mxu0 %v1334
        %1452 = vmatpush2.bf16.msra.mxu0 %v1333
        %1453 = vmatprep.subr.bf16.mxu0 %v1332
        %1454 = vmatpush2.bf16.msra.mxu0 %v1331
        %1455 = vmatprep.subr.bf16.mxu0 %v1330
        %1456 = vmatpush2.bf16.msra.mxu0 %v1329
        %1457 = vmatprep.subr.bf16.mxu0 %v1328
        %1458 = vmatpush2.bf16.msra.mxu0 %v1327
        %1459 = vmatprep.subr.bf16.mxu0 %v1326
        %1460 = vmatpush2.bf16.msra.mxu0 %v1325
        %1461 = vmatprep.subr.bf16.mxu0 %v1324
        %1462 = vmatpush2.bf16.msra.mxu0 %v1323
        %1463 = vmatprep.subr.bf16.mxu0 %v1322
        %1464 = vmatpush2.bf16.msra.mxu0 %v1321
        %1465 = vmatprep.mubr.bf16.mxu0 %v1034
        %1466 = vmatmul.mubr.bf16.gmra.mxu0 %v1033
        %v1467 = vpop.f32.mrf.mxu0
        %v1468 = vadd.f32 %v1106, %v1467
        %v1469 = vpop.f32.mrf.mxu0
        %v1470 = vadd.f32 %v1110, %v1469
        %v1471 = vpop.f32.mrf.mxu0
        %v1472 = vadd.f32 %v1106, %v1471
        %v1473 = vpop.f32.mrf.mxu0
        %v1474 = vadd.f32 %v1110, %v1473
        %1475 = vdwg.mxu0
        %1476 = vmatprep.subr.bf16.mxu0 %v1352
        %1477 = vmatpush1.bf16.msra.mxu0 %v1351
        %1478 = vmatprep.subr.bf16.mxu0 %v1350
        %1479 = vmatpush1.bf16.msra.mxu0 %v1349
        %1480 = vmatprep.subr.bf16.mxu0 %v1348
        %1481 = vmatpush1.bf16.msra.mxu0 %v1347
        %1482 = vmatprep.subr.bf16.mxu0 %v1346
        %1483 = vmatpush1.bf16.msra.mxu0 %v1345
        %1484 = vmatprep.subr.bf16.mxu0 %v1344
        %1485 = vmatpush1.bf16.msra.mxu0 %v1343
        %1486 = vmatprep.subr.bf16.mxu0 %v1342
        %1487 = vmatpush1.bf16.msra.mxu0 %v1341
        %1488 = vmatprep.subr.bf16.mxu0 %v1340
        %1489 = vmatpush1.bf16.msra.mxu0 %v1339
        %1490 = vmatprep.subr.bf16.mxu0 %v1338
        %1491 = vmatpush1.bf16.msra.mxu0 %v1337
        %1492 = vmatprep.subr.bf16.mxu0 %v1368
        %1493 = vmatpush2.bf16.msra.mxu0 %v1367
        %1494 = vmatprep.subr.bf16.mxu0 %v1366
        %1495 = vmatpush2.bf16.msra.mxu0 %v1365
        %1496 = vmatprep.subr.bf16.mxu0 %v1364
        %1497 = vmatpush2.bf16.msra.mxu0 %v1363
        %1498 = vmatprep.subr.bf16.mxu0 %v1362
        %1499 = vmatpush2.bf16.msra.mxu0 %v1361
        %1500 = vmatprep.subr.bf16.mxu0 %v1360
        %1501 = vmatpush2.bf16.msra.mxu0 %v1359
        %1502 = vmatprep.subr.bf16.mxu0 %v1358
        %1503 = vmatpush2.bf16.msra.mxu0 %v1357
        %1504 = vmatprep.subr.bf16.mxu0 %v1356
        %1505 = vmatpush2.bf16.msra.mxu0 %v1355
        %1506 = vmatprep.subr.bf16.mxu0 %v1354
        %1507 = vmatpush2.bf16.msra.mxu0 %v1353
        %1508 = vmatprep.mubr.bf16.mxu0 %v1036
        %1509 = vmatmul.mubr.bf16.gmra.mxu0 %v1035
        %v1510 = vpop.f32.mrf.mxu0
        %v1511 = vadd.f32 %v1468, %v1510
        %v1512 = vpop.f32.mrf.mxu0
        %v1513 = vadd.f32 %v1470, %v1512
        %v1514 = vpop.f32.mrf.mxu0
        %v1515 = vadd.f32 %v1472, %v1514
        %v1516 = vpop.f32.mrf.mxu0
        %v1517 = vadd.f32 %v1474, %v1516
        %1518 = vdwg.mxu0
        %v1519 = vmax.f32 %v1511, 0.0
        %v1520 = vmax.f32 %v1513, 0.0
        %v1521 = vmax.f32 %v1515, 0.0
        %v1522 = vmax.f32 %v1517, 0.0
        %v1523 = vpack.c.bf16 %v1521, %v1519
        %v1524 = vpack.c.bf16 %v1522, %v1520
        %v1525 = vld [vmem:[#allocation10] sm:$0xf]
        %v1526 = vld [vmem:[#allocation10 + $0x4] sm:$0xf]
        %v1527 = vld [vmem:[#allocation10 + $0x8] sm:$0xf]
        %v1528 = vld [vmem:[#allocation10 + $0xc] sm:$0xf]
        %v1529 = vld [vmem:[#allocation10 + $0x10] sm:$0xf]
        %v1530 = vld [vmem:[#allocation10 + $0x14] sm:$0xf]
        %v1531 = vld [vmem:[#allocation10 + $0x18] sm:$0xf]
        %v1532 = vld [vmem:[#allocation10 + $0x1c] sm:$0xf]
        %v1533 = vld [vmem:[#allocation10 + $0x20] sm:$0xf]
        %v1534 = vld [vmem:[#allocation10 + $0x24] sm:$0xf]
        %v1535 = vld [vmem:[#allocation10 + $0x28] sm:$0xf]
        %v1536 = vld [vmem:[#allocation10 + $0x2c] sm:$0xf]
        %v1537 = vld [vmem:[#allocation10 + $0x30] sm:$0xf]
        %v1538 = vld [vmem:[#allocation10 + $0x34] sm:$0xf]
        %v1539 = vld [vmem:[#allocation10 + $0x38] sm:$0xf]
        %v1540 = vld [vmem:[#allocation10 + $0x3c] sm:$0xf]
        %v1541 = vld [vmem:[#allocation10 + $0x40] sm:$0xf]
        %v1542 = vld [vmem:[#allocation10 + $0x44] sm:$0xf]
        %v1543 = vld [vmem:[#allocation10 + $0x48] sm:$0xf]
        %v1544 = vld [vmem:[#allocation10 + $0x4c] sm:$0xf]
        %v1545 = vld [vmem:[#allocation10 + $0x50] sm:$0xf]
        %v1546 = vld [vmem:[#allocation10 + $0x54] sm:$0xf]
        %v1547 = vld [vmem:[#allocation10 + $0x58] sm:$0xf]
        %v1548 = vld [vmem:[#allocation10 + $0x5c] sm:$0xf]
        %v1549 = vld [vmem:[#allocation10 + $0x60] sm:$0xf]
        %v1550 = vld [vmem:[#allocation10 + $0x64] sm:$0xf]
        %v1551 = vld [vmem:[#allocation10 + $0x68] sm:$0xf]
        %v1552 = vld [vmem:[#allocation10 + $0x6c] sm:$0xf]
        %v1553 = vld [vmem:[#allocation10 + $0x70] sm:$0xf]
        %v1554 = vld [vmem:[#allocation10 + $0x74] sm:$0xf]
        %v1555 = vld [vmem:[#allocation10 + $0x78] sm:$0xf]
        %v1556 = vld [vmem:[#allocation10 + $0x7c] sm:$0xf]
        %v1557 = vld [vmem:[%s6 + $0x8] sm:$0x1]
        %v1559 = vlaneseq
        %v1560 = vshrl.u32 %v1559, 7
        %v1561 = vsub.s32 0, %v1560
        %v1562 = vrot.slane %v1557, %v1561
        %v1596 = vunpack.c.l.b16 %v1525
        %v1597 = vunpack.c.l.b16 %v1526
        %v1598 = vunpack.c.l.b16 %v1527
        %v1599 = vunpack.c.l.b16 %v1528
        %v1600 = vunpack.c.l.b16 %v1529
        %v1601 = vunpack.c.l.b16 %v1530
        %v1602 = vunpack.c.l.b16 %v1531
        %v1603 = vunpack.c.l.b16 %v1532
        %v1604 = vunpack.c.l.b16 %v1533
        %v1605 = vunpack.c.l.b16 %v1534
        %v1606 = vunpack.c.l.b16 %v1535
        %v1607 = vunpack.c.l.b16 %v1536
        %v1608 = vunpack.c.l.b16 %v1537
        %v1609 = vunpack.c.l.b16 %v1538
        %v1610 = vunpack.c.l.b16 %v1539
        %v1611 = vunpack.c.l.b16 %v1540
        %v1612 = vunpack.c.l.b16 %v1541
        %v1613 = vunpack.c.l.b16 %v1542
        %v1614 = vunpack.c.l.b16 %v1543
        %v1615 = vunpack.c.l.b16 %v1544
        %v1616 = vunpack.c.l.b16 %v1545
        %v1617 = vunpack.c.l.b16 %v1546
        %v1618 = vunpack.c.l.b16 %v1547
        %v1619 = vunpack.c.l.b16 %v1548
        %v1620 = vunpack.c.l.b16 %v1549
        %v1621 = vunpack.c.l.b16 %v1550
        %v1622 = vunpack.c.l.b16 %v1551
        %v1623 = vunpack.c.l.b16 %v1552
        %v1624 = vunpack.c.l.b16 %v1553
        %v1625 = vunpack.c.l.b16 %v1554
        %v1626 = vunpack.c.l.b16 %v1555
        %v1627 = vunpack.c.l.b16 %v1556
        %v1628 = vpack.c.b16 %v1597, %v1596
        %v1629 = vpack.c.b16 %v1599, %v1598
        %v1630 = vpack.c.b16 %v1601, %v1600
        %v1631 = vpack.c.b16 %v1603, %v1602
        %v1632 = vpack.c.b16 %v1605, %v1604
        %v1633 = vpack.c.b16 %v1607, %v1606
        %v1634 = vpack.c.b16 %v1609, %v1608
        %v1635 = vpack.c.b16 %v1611, %v1610
        %v1636 = vpack.c.b16 %v1613, %v1612
        %v1637 = vpack.c.b16 %v1615, %v1614
        %v1638 = vpack.c.b16 %v1617, %v1616
        %v1639 = vpack.c.b16 %v1619, %v1618
        %v1640 = vpack.c.b16 %v1621, %v1620
        %v1641 = vpack.c.b16 %v1623, %v1622
        %v1642 = vpack.c.b16 %v1625, %v1624
        %v1643 = vpack.c.b16 %v1627, %v1626
        %1660 = vmatprep.subr.bf16.mxu0 0
        %1661 = vmatpush1.bf16.msra.mxu0 %v1635
        %1662 = vmatprep.subr.bf16.mxu0 0
        %1663 = vmatpush1.bf16.msra.mxu0 %v1634
        %1664 = vmatprep.subr.bf16.mxu0 0
        %1665 = vmatpush1.bf16.msra.mxu0 %v1633
        %1666 = vmatprep.subr.bf16.mxu0 0
        %1667 = vmatpush1.bf16.msra.mxu0 %v1632
        %1668 = vmatprep.subr.bf16.mxu0 0
        %1669 = vmatpush1.bf16.msra.mxu0 %v1631
        %1670 = vmatprep.subr.bf16.mxu0 0
        %1671 = vmatpush1.bf16.msra.mxu0 %v1630
        %1672 = vmatprep.subr.bf16.mxu0 0
        %1673 = vmatpush1.bf16.msra.mxu0 %v1629
        %1674 = vmatprep.subr.bf16.mxu0 0
        %1675 = vmatpush1.bf16.msra.mxu0 %v1628
        %1676 = vmatprep.subr.bf16.mxu0 0
        %1677 = vmatpush2.bf16.msra.mxu0 %v1643
        %1678 = vmatprep.subr.bf16.mxu0 0
        %1679 = vmatpush2.bf16.msra.mxu0 %v1642
        %1680 = vmatprep.subr.bf16.mxu0 0
        %1681 = vmatpush2.bf16.msra.mxu0 %v1641
        %1682 = vmatprep.subr.bf16.mxu0 0
        %1683 = vmatpush2.bf16.msra.mxu0 %v1640
        %1684 = vmatprep.subr.bf16.mxu0 0
        %1685 = vmatpush2.bf16.msra.mxu0 %v1639
        %1686 = vmatprep.subr.bf16.mxu0 0
        %1687 = vmatpush2.bf16.msra.mxu0 %v1638
        %1688 = vmatprep.subr.bf16.mxu0 0
        %1689 = vmatpush2.bf16.msra.mxu0 %v1637
        %1690 = vmatprep.subr.bf16.mxu0 0
        %1691 = vmatpush2.bf16.msra.mxu0 %v1636
        %1692 = vmatprep.mubr.bf16.mxu0 %v1524
        %1693 = vmatmul.mubr.bf16.gmra.mxu0 %v1523
        %v1694 = vpop.f32.mrf.mxu0
        %v1695 = vadd.f32 %v1562, %v1694
        %v1696 = vpop.f32.mrf.mxu0
        %v1697 = vpop.f32.mrf.mxu0
        %v1698 = vadd.f32 %v1562, %v1697
        %v1699 = vpop.f32.mrf.mxu0
        %1700 = vdwg.mxu0
        %v1701 = vmax.f32 %v1695, 0.0
        %v1702 = vmax.f32 %v1698, 0.0
        %v1703 = vpack.c.bf16 %v1702, %v1701
        %v1704 = vld [vmem:[#allocation11] sm:$0xf]
        %v1705 = vld [vmem:[#allocation11 + $0x4] sm:$0xf]
        %v1706 = vld [vmem:[#allocation11 + $0x8] sm:$0xf]
        %v1707 = vld [vmem:[#allocation11 + $0xc] sm:$0xf]
        %v1708 = vld [vmem:[#allocation11 + $0x10] sm:$0xf]
        %v1709 = vld [vmem:[#allocation11 + $0x14] sm:$0xf]
        %v1710 = vld [vmem:[#allocation11 + $0x18] sm:$0xf]
        %v1711 = vld [vmem:[#allocation11 + $0x1c] sm:$0xf]
        %v1712 = vld [vmem:[#allocation11 + $0x20] sm:$0xf]
        %v1713 = vld [vmem:[#allocation11 + $0x24] sm:$0xf]
        %v1714 = vld [vmem:[#allocation11 + $0x28] sm:$0xf]
        %v1715 = vld [vmem:[#allocation11 + $0x2c] sm:$0xf]
        %v1716 = vld [vmem:[#allocation11 + $0x30] sm:$0xf]
        %v1717 = vld [vmem:[#allocation11 + $0x34] sm:$0xf]
        %v1718 = vld [vmem:[#allocation11 + $0x38] sm:$0xf]
        %v1719 = vld [vmem:[#allocation11 + $0x3c] sm:$0xf]
        %v1720 = vld [vmem:[%s6 + $0x9] sm:$0x1]
        %v1722 = vlaneseq
        %v1723 = vshrl.u32 %v1722, 7
        %v1724 = vsub.s32 0, %v1723
        %v1725 = vrot.slane %v1720, %v1724
        %v1743 = vunpack.c.l.b16 %v1704
        %v1744 = vunpack.c.l.b16 %v1705
        %v1745 = vunpack.c.l.b16 %v1706
        %v1746 = vunpack.c.l.b16 %v1707
        %v1747 = vunpack.c.l.b16 %v1708
        %v1748 = vunpack.c.l.b16 %v1709
        %v1749 = vunpack.c.l.b16 %v1710
        %v1750 = vunpack.c.l.b16 %v1711
        %v1751 = vunpack.c.l.b16 %v1712
        %v1752 = vunpack.c.l.b16 %v1713
        %v1753 = vunpack.c.l.b16 %v1714
        %v1754 = vunpack.c.l.b16 %v1715
        %v1755 = vunpack.c.l.b16 %v1716
        %v1756 = vunpack.c.l.b16 %v1717
        %v1757 = vunpack.c.l.b16 %v1718
        %v1758 = vunpack.c.l.b16 %v1719
        %v1759 = vpack.c.b16 %v1744, %v1743
        %v1760 = vpack.c.b16 %v1746, %v1745
        %v1761 = vpack.c.b16 %v1748, %v1747
        %v1762 = vpack.c.b16 %v1750, %v1749
        %v1763 = vpack.c.b16 %v1752, %v1751
        %v1764 = vpack.c.b16 %v1754, %v1753
        %v1765 = vpack.c.b16 %v1756, %v1755
        %v1766 = vpack.c.b16 %v1758, %v1757
        %1775 = vmatprep.subr.bf16.mxu0 0
        %1776 = vmatpush1.bf16.msra.mxu0 %v1766
        %1777 = vmatprep.subr.bf16.mxu0 0
        %1778 = vmatpush1.bf16.msra.mxu0 %v1765
        %1779 = vmatprep.subr.bf16.mxu0 0
        %1780 = vmatpush1.bf16.msra.mxu0 %v1764
        %1781 = vmatprep.subr.bf16.mxu0 0
        %1782 = vmatpush1.bf16.msra.mxu0 %v1763
        %1783 = vmatprep.subr.bf16.mxu0 0
        %1784 = vmatpush1.bf16.msra.mxu0 %v1762
        %1785 = vmatprep.subr.bf16.mxu0 0
        %1786 = vmatpush1.bf16.msra.mxu0 %v1761
        %1787 = vmatprep.subr.bf16.mxu0 0
        %1788 = vmatpush1.bf16.msra.mxu0 %v1760
        %1789 = vmatprep.subr.bf16.mxu0 0
        %1790 = vmatpush1.bf16.msra.mxu0 %v1759
        %1791 = vmatprep.subr.bf16.mxu0 0
        %1792 = vmatpush2.bf16.msra.mxu0 0
        %1793 = vmatprep.subr.bf16.mxu0 0
        %1794 = vmatpush2.bf16.msra.mxu0 0
        %1795 = vmatprep.subr.bf16.mxu0 0
        %1796 = vmatpush2.bf16.msra.mxu0 0
        %1797 = vmatprep.subr.bf16.mxu0 0
        %1798 = vmatpush2.bf16.msra.mxu0 0
        %1799 = vmatprep.subr.bf16.mxu0 0
        %1800 = vmatpush2.bf16.msra.mxu0 0
        %1801 = vmatprep.subr.bf16.mxu0 0
        %1802 = vmatpush2.bf16.msra.mxu0 0
        %1803 = vmatprep.subr.bf16.mxu0 0
        %1804 = vmatpush2.bf16.msra.mxu0 0
        %1805 = vmatprep.subr.bf16.mxu0 0
        %1806 = vmatpush2.bf16.msra.mxu0 0
        %1807 = vmatprep.mubr.bf16.mxu0 0
        %1808 = vmatmul.mubr.bf16.gmra.mxu0 %v1703
        %v1809 = vpop.f32.mrf.mxu0
        %v1810 = vadd.f32 %v1725, %v1809
        %v1811 = vpop.f32.mrf.mxu0
        %v1812 = vpop.f32.mrf.mxu0
        %v1813 = vadd.f32 %v1725, %v1812
        %v1814 = vpop.f32.mrf.mxu0
        %1815 = vdwg.mxu0
        %1818 = vrot.lane.b32.xlu0 %v1810, 1
        %v1819 = vpop.permute.xlu0 %1818
        %1820 = vrot.lane.b32.xlu0 %v1813, 1
        %v1821 = vpop.permute.xlu0 %1820
        %v1824 = vsub.f32 %v1810, %v1819
        %v1825 = vsub.f32 %v1813, %v1821
        %v1826 = vxor.u32 %v1824, 2147483648
        %v1827 = vxor.u32 %v1825, 2147483648
        %v1828 = vmul.f32 %v1826, 1.442695
        %v1829 = vpow.pop %v1828
        %v1830 = vmul.f32 %v1827, 1.442695
        %v1831 = vpow.pop %v1830
        %v1832 = vadd.f32 %v1829, 1.0
        %v1833 = vadd.f32 %v1831, 1.0
        %v1834 = vrcp.pop %v1832
        %v1835 = vmul.f32 1.0, %v1834
        %v1836 = vrcp.pop %v1833
        %v1837 = vmul.f32 1.0, %v1836
        %v1838 = vsub.f32 1.0, %v1835
        %v1839 = vsub.f32 1.0, %v1837
        %v1840 = vlaneseq
        %v1841 = vand.u32 %v1840, 127
        %vm1842 = vcmp.eq.s32.totalorder %v1841, 0
        %vm1843 = vcmp.eq.s32.totalorder %v1841, 1
        %1845 = vset.pattern.permute.xlu0 1
        %1846 = vperm.xlu0 %1845, %v1835
        %v1847 = vpop.permute.xlu0 %1846
        %1850 = vset.pattern.permute.xlu0 1
        %1851 = vperm.xlu0 %1850, %v1837
        %v1852 = vpop.permute.xlu0 %1851
        %v1854 = vsel %vm1843, %v1847, 0.0
        %v1855 = vsel %vm1843, %v1852, 0.0
        %1857 = vset.pattern.permute.xlu0 1
        %1858 = vperm.xlu0 %1857, %v1838
        %v1859 = vpop.permute.xlu0 %1858
        %1862 = vset.pattern.permute.xlu0 1
        %1863 = vperm.xlu0 %1862, %v1839
        %v1864 = vpop.permute.xlu0 %1863
        %v1866 = vsel %vm1842, %v1859, %v1854
        %v1867 = vsel %vm1842, %v1864, %v1855
        %1868 = vst [vmem:[%s369] sm:$0xff] %v1866
        %1869 = vst [vmem:[%s369 + $0x8] sm:$0xff] %v1867
        %s1870 = sand.u32 %s187, 1
        %s1871 = scalar_lea.sflag [#allocation4], %s1870
        %s1872 = sand.u32 %s187, 1
        %s1873 = smul.addr %s1872, 16
        %s1874 = scalar_lea.vmem [#allocation13], %s1873
        // Predicated region
        $region73: #{tpu_custom_call.1} parent=47 // pred_check
          %p1875 = pneg %p197
        $region74: #{tpu_custom_call.1} parent=47 // pred_check_branch
          %1877 = sbr.rel (%p1875) target = $region76
        $region75: #{tpu_custom_call.1} parent=47 // pred_region
          %s1878 = smul.u32 2, %s27
          %s1880 = ssub.s32 256, 256
          %1881 = vsyncadd %s1871, %s1880
          %s1882 = smul.addr %s1878, 128
          %s1883 = scalar_lea.hbm %s7, %s1882
          %s1884 = sshll.u32 %s1874, 4
          %s1885 = int_to_ptr.vmem [resolvable:$true] %s1884
          %1890 = dma.vmem_to_hbm [thread:$0]  %s1885, 256, %s1883, %s1871, 128, 128, 8
        $region76: #{tpu_custom_call.1} parent=47 // pred_fallthru
          _
      $region48: #{tpu_custom_call.1} parent=5 // pred_fallthru
        _
      %p1891 = scmp.le.s32.totalorder 2, %s22
      // Predicated region
      $region77: #{tpu_custom_call.1} parent=5 // pred_check
        %p1892 = pneg %p1891
      $region78: #{tpu_custom_call.1} parent=5 // pred_check_branch
        %1894 = sbr.rel (%p1892) target = $region80
      $region79: #{tpu_custom_call.1} parent=5 // pred_region
        %s1895 = ssub.s32 %s22, 2
        // Predicated region
        $region81: #{tpu_custom_call.1} parent=79 // pred_check
          %p1896 = pneg %p203
        $region82: #{tpu_custom_call.1} parent=79 // pred_check_branch
          %1898 = sbr.rel (%p1896) target = $region84
        $region83: #{tpu_custom_call.1} parent=79 // pred_region
          %s1899 = sand.u32 %s188, 1
          %s1900 = scalar_lea.sflag [#allocation4], %s1899
          %s1901 = sand.u32 %s188, 1
          %s1902 = smul.addr %s1901, 16
          %s1903 = scalar_lea.vmem [#allocation13], %s1902
          %1904 = dma.done %s1900, 256
        $region84: #{tpu_custom_call.1} parent=79 // pred_fallthru
          _
      $region80: #{tpu_custom_call.1} parent=5 // pred_fallthru
        _
    $region6: #{tpu_custom_call.1} parent=1 // loop_footer
      %s26 = sadd.s32 1, %s22
    $region7: #{tpu_custom_call.1} parent=1 // loop_footer_branch
      %21 = sbr.rel target = $region3
    $region8: #{tpu_custom_call.1} parent=1 // loop_exit
      _
    %1905 = vsyncpa [#allocation3], 1
    %s1906 = scalar_lea.sflag [#allocation3], 1
    %1907 = vsyncpa %s1906, 1
    %1908 = vsyncpa [#allocation6], 1
    %1909 = vsyncpa [#allocation9], 1
    %1910 = vsyncpa [#allocation12], 1
    %1911 = vsyncpa [#allocation4], 1
    %s1912 = scalar_lea.sflag [#allocation4], 1
    %1913 = vsyncpa %s1912, 1

</llo_original>
